<compile_context>
chip_gen: v5e
topology: v5e:2x2
jax: 0.10.0
libtpu: 0.0.40
codegen_flags: <defaults>
</compile_context>

<pallas_src>
import numpy as np
import jax
import jax.numpy as jnp
from jax.experimental import pallas as pl
from jax.experimental.pallas import tpu as pltpu


def _pick_batch_block(B):
    # Amortize per-grid-step overhead over several batch elements, but keep >= 2 grid
    # steps when possible so both v7x TensorCores get work (v5e/v6e single-TC: neutral).
    # BB <= 8 keeps the cols scratch <= ~1 MiB f32 (fits every generation's scoped VMEM).
    for bb in (8, 4, 2):
        if B % bb == 0 and B // bb >= 2:
            return bb
    return 1


# ---------------------------------------------------------------------------
# Fused Pallas kernel: im2col + conv-matmul + ReLU + fc + softmax (BB batches / grid step)
# ---------------------------------------------------------------------------
def _make_fused_kernel(*, BB, Cin, H, W, KH, KW, Cout, CKK, CKK_pad, NCLS_PAD):
    HW = H * W
    n_taps = KH * KW
    # Pair taps so each im2col store covers a full 8-sublane group when possible.
    group = (8 // Cin) if (Cin < 8 and 8 % Cin == 0) else 1

    def kernel(x_ref, wconv_ref, wfc_ref, bias_ref, o_ref, cols_ref):
        # x_ref    : (BB, Cin, H*W)            BB batch elements (NCHW, HW flattened)
        # wconv_ref: (Cout, CKK_pad)           conv weight, rows ordered (kh, kw, cin), K zero-padded
        # wfc_ref  : (Cout, H*W, NCLS_PAD)     fc weight with flatten order + spatial/class pad folded in
        # bias_ref : (1, NCLS_PAD)             pad lanes = -1e30
        # o_ref    : (BB, 1, NCLS_PAD)
        # cols_ref : VMEM scratch (CKK_pad, BB*H*W)

        # ---- zero ONLY the K-pad rows, every step (rows 0..CKK-1 are fully rewritten
        # below; pad rows must stay zero so 0 x NaN can't reach the MXU).
        if CKK_pad > CKK:
            cols_ref[CKK:CKK_pad, :] = jnp.zeros((CKK_pad - CKK, BB * HW), jnp.float32)

        # ---- in-kernel im2col via full-width lane rotations (XLU) + unmasked stores:
        #   cols[(kh*KW+kw)*Cin + cin, b*HW + s] = x[b, cin, (s + kh*W + kw) mod HW]
        # Wrapped tail values only hit invalid output positions (zeroed in the fc weight).
        for b in range(BB):
            xb = x_ref[b]                                          # (Cin, HW) aligned load
            for t0 in range(0, n_taps, group):
                g = min(group, n_taps - t0)
                pieces = []
                for t in range(t0, t0 + g):
                    kh, kw = divmod(t, KW)
                    shift = (HW - (kh * W + kw)) % HW              # roll left by (kh*W+kw)
                    pieces.append(pltpu.roll(xb, shift, axis=1) if shift else xb)
                blk = pieces[0] if g == 1 else jnp.concatenate(pieces, axis=0)
                cols_ref[t0 * Cin:(t0 + g) * Cin, b * HW:(b + 1) * HW] = blk

        # ---- conv as one lane-dense MXU matmul (M=Cout, K=CKK_pad, N=BB*HW) + fused ReLU
        y = jnp.dot(wconv_ref[...], cols_ref[...], preferred_element_type=jnp.float32)
        y = jnp.maximum(y, 0.0)                                    # (Cout, BB*HW)

        # ---- fc: flatten folded into wfc. Cout partials are INDEPENDENT dots (no
        # serialized accumulate chain); reduced with one sublane concat + sum.
        bias = bias_ref[...]                                       # (1, NCLS_PAD)
        rows = []
        for b in range(BB):
            parts = [
                jnp.dot(y[c:c + 1, b * HW:(b + 1) * HW], wfc_ref[c],
                        preferred_element_type=jnp.float32)        # (1, NCLS_PAD)
                for c in range(Cout)
            ]
            stacked = parts[0] if Cout == 1 else jnp.concatenate(parts, axis=0)
            rows.append(jnp.sum(stacked, axis=0, keepdims=True))   # (1, NCLS_PAD)
        logits = (rows[0] if BB == 1 else jnp.concatenate(rows, axis=0)) + bias

        # ---- numerically stable, lane-dense softmax; padded class lanes (-1e30 bias)
        # underflow to exactly 0. Exact divide -> probabilities sum to 1.
        m = jnp.max(logits, axis=-1, keepdims=True)
        e = jnp.exp(logits - m)
        s = jnp.sum(e, axis=-1, keepdims=True)
        probs = e / s                                              # (BB, NCLS_PAD)
        for b in range(BB):
            o_ref[b] = probs[b:b + 1, :]

    return kernel


# ---------------------------------------------------------------------------
# Factory: one-time weight re-layout (hoisted out of the per-call path) + jitted forward
# ---------------------------------------------------------------------------
def make_conv_pixel_characters_forward(w_conv, w_fc, b_fc, data_size):
    """
    w_conv   : (Cout, Cin, KH, KW)  PyTorch Conv2d weight (bias=False)
    w_fc     : (n_classes, F)       PyTorch Linear weight, F = Cout*OH*OW
    b_fc     : (n_classes,)         PyTorch Linear bias
    data_size: (Cin, H, W)
    returns  : jitted forward(x: (B, Cin, H, W)) -> (B, n_classes) softmax probabilities
    """
    Cin, H, W = data_size
    Cout, Cin_w, KH, KW = w_conv.shape
    assert Cin_w == Cin
    OH, OW = H - KH + 1, W - KW + 1              # stride (1,1), no padding
    HW = H * W
    CKK = Cin * KH * KW
    CKK_pad = ((CKK + 127) // 128) * 128         # contraction dim padded to a lane multiple
    n_classes, F = w_fc.shape
    assert F == Cout * OH * OW
    NCLS_PAD = ((n_classes + 127) // 128) * 128  # lane-dense fc N / output stores

    # --- one-time weight prep (runs once, NOT inside the per-call jit) ---
    # conv weight -> (Cout, CKK_pad), rows ordered (kh, kw, cin), zero-padded K
    w_perm = jnp.transpose(w_conv.astype(jnp.float32), (2, 3, 1, 0)).reshape(CKK, Cout)
    w_perm = jnp.pad(w_perm, ((0, CKK_pad - CKK), (0, 0)))
    w_conv_t = jnp.transpose(w_perm)                                 # (Cout, CKK_pad)

    # fc weight -> (Cout, H*W, NCLS_PAD): PyTorch (Cout, OH, OW) flatten order folded in;
    # invalid (padded) spatial positions AND padded class columns are ZERO — this is what
    # makes the rolled-tail / K-pad garbage in the kernel harmless.
    w_fc_r = jnp.transpose(w_fc.astype(jnp.float32).reshape(n_classes, Cout, OH, OW),
                           (1, 2, 3, 0))                             # (Cout, OH, OW, n_classes)
    w_fc_full = jnp.zeros((Cout, H, W, NCLS_PAD), jnp.float32)
    w_fc_full = w_fc_full.at[:, :OH, :OW, :n_classes].set(w_fc_r)
    w_fc_k = w_fc_full.reshape(Cout, HW, NCLS_PAD)                   # (Cout, H*W, NCLS_PAD)

    # bias -> (1, NCLS_PAD); padded class lanes get -1e30 so their softmax prob is exactly 0.
    b_pad = jnp.full((1, NCLS_PAD), -1e30, jnp.float32)
    b_pad = b_pad.at[0, :n_classes].set(b_fc.astype(jnp.float32))

    @jax.jit
    def forward(x):
        B = x.shape[0]
        BB = _pick_batch_block(B)
        x_flat = x.reshape(B, Cin, HW).astype(jnp.float32)           # trivial row-major reshape

        kernel = _make_fused_kernel(BB=BB, Cin=Cin, H=H, W=W, KH=KH, KW=KW,
                                    Cout=Cout, CKK=CKK, CKK_pad=CKK_pad,
                                    NCLS_PAD=NCLS_PAD)

        out = pl.pallas_call(
            kernel,
            out_shape=jax.ShapeDtypeStruct((B, 1, NCLS_PAD), jnp.float32),
            grid=(B // BB,),
            in_specs=[
                pl.BlockSpec((BB, Cin, HW), lambda g: (g, 0, 0)),
                pl.BlockSpec((Cout, CKK_pad), lambda g: (0, 0)),
                pl.BlockSpec((Cout, HW, NCLS_PAD), lambda g: (0, 0, 0)),
                pl.BlockSpec((1, NCLS_PAD), lambda g: (0, 0)),
            ],
            out_specs=pl.BlockSpec((BB, 1, NCLS_PAD), lambda g: (g, 0, 0)),
            scratch_shapes=[pltpu.VMEM((CKK_pad, BB * HW), jnp.float32)],
            compiler_params=pltpu.CompilerParams(
                dimension_semantics=("parallel",)),
        )(x_flat, w_conv_t, w_fc_k, b_pad)

        return out[:, 0, :n_classes]

    return forward


# ---------------------------------------------------------------------------
# Pure-JAX reference (mirrors the PyTorch forward exactly)
# ---------------------------------------------------------------------------
def reference_forward(x, w_conv, w_fc, b_fc):
    y = jax.lax.conv_general_dilated(
        x, w_conv, window_strides=(1, 1), padding="VALID",
        dimension_numbers=("NCHW", "OIHW", "NCHW"))
    y = jnp.maximum(y, 0.0)
    y = y.reshape(y.shape[0], -1)
    logits = y @ w_fc.T + b_fc
    return jax.nn.softmax(logits, axis=1)


if __name__ == "__main__":
    # Module hyperparameters implied by __init__:
    #   n_feature_maps=[(4, 8)], kernel=(5,5), stride=(1,1), bias=False conv,
    #   data_size = (Cin=4, 16, 16) -> conv_out_dim = (8, 12, 12), fc in = 1152.
    B, Cin, H, W = 2, 4, 16, 16
    Cout, KH, KW = 8, 5, 5
    n_classes = 10
    F = Cout * (H - KH + 1) * (W - KW + 1)

    key = jax.random.PRNGKey(0)
    kx, kwc, kwf, kbf = jax.random.split(key, 4)
    x = jax.random.normal(kx, (B, Cin, H, W), dtype=jnp.float32)
    w_conv = 0.1 * jax.random.normal(kwc, (Cout, Cin, KH, KW), dtype=jnp.float32)
    w_fc = 0.05 * jax.random.normal(kwf, (n_classes, F), dtype=jnp.float32)
    b_fc = 0.01 * jax.random.normal(kbf, (n_classes,), dtype=jnp.float32)

    forward = make_conv_pixel_characters_forward(w_conv, w_fc, b_fc, data_size=(Cin, H, W))
    out = jax.block_until_ready(forward(x))
    ref = jax.block_until_ready(reference_forward(x, w_conv, w_fc, b_fc))

    assert out.shape == (B, n_classes)
    np.testing.assert_allclose(np.asarray(out), np.asarray(ref), rtol=2e-2, atol=2e-3)

    print("KERNEL_OK")
</pallas_src>

<mosaic_0001>
module attributes {stable_mosaic.version = 11 : i64} {
  func.func @kernel(%arg0: i32, %arg1: memref<1x4x256xf32, #tpu.memory_space<vmem>>, %arg2: memref<8x128xf32, #tpu.memory_space<vmem>>, %arg3: memref<8x256x128xf32, #tpu.memory_space<vmem>>, %arg4: memref<1x128xf32, #tpu.memory_space<vmem>>, %arg5: memref<1x1x128xf32, #tpu.memory_space<vmem>>, %arg6: memref<128x256xf32, #tpu.memory_space<vmem>>) attributes {dimension_semantics = [#tpu.dimension_semantics<parallel>], iteration_bounds = array<i64: 2>, scalar_prefetch = 0 : i64, scratch_operands = 1 : i64, tpu.core_type = #tpu.core_type<tc>, window_params = [{transform_indices = @transform_0, window_bounds = array<i64: 1, 4, 256>}, {pipeline_mode = #tpu.pipeline_mode<synchronous>, transform_indices = @transform_1, window_bounds = array<i64: 8, 128>}, {pipeline_mode = #tpu.pipeline_mode<synchronous>, transform_indices = @transform_2, window_bounds = array<i64: 8, 256, 128>}, {pipeline_mode = #tpu.pipeline_mode<synchronous>, transform_indices = @transform_3, window_bounds = array<i64: 1, 128>}, {transform_indices = @transform_4, window_bounds = array<i64: 1, 1, 128>}]} {
    %cst = arith.constant 0.000000e+00 : f32
    %0 = vector.broadcast %cst : f32 to vector<28x256xf32>
    %c100 = arith.constant 100 : index
    %c0 = arith.constant 0 : index
    %1 = vector.load %arg6[%c100, %c0] : memref<128x256xf32, #tpu.memory_space<vmem>>, vector<28x256xf32>
    tpu.vector_store %arg6[%c100, %c0], %0 {strides = array<i32>} : memref<128x256xf32, #tpu.memory_space<vmem>>, vector<28x256xf32>,
    %c0_0 = arith.constant 0 : index
    %c0_1 = arith.constant 0 : index
    %c0_2 = arith.constant 0 : index
    %2 = vector.load %arg1[%c0_0, %c0_1, %c0_2] : memref<1x4x256xf32, #tpu.memory_space<vmem>>, vector<1x4x256xf32>
    %3 = vector.shape_cast %2 : vector<1x4x256xf32> to vector<4x256xf32>
    %c255_i32 = arith.constant 255 : i32
    %4 = tpu.dynamic_rotate %3 by %c255_i32 dim 1 : vector<4x256xf32>, i32 -> vector<4x256xf32>
    %5 = tpu.concatenate %3, %4 in 0 : vector<4x256xf32>, vector<4x256xf32> -> vector<8x256xf32>
    %c0_3 = arith.constant 0 : index
    %c0_4 = arith.constant 0 : index
    %6 = vector.load %arg6[%c0_3, %c0_4] : memref<128x256xf32, #tpu.memory_space<vmem>>, vector<8x256xf32>
    tpu.vector_store %arg6[%c0_3, %c0_4], %5 {strides = array<i32>} : memref<128x256xf32, #tpu.memory_space<vmem>>, vector<8x256xf32>,
    %c254_i32 = arith.constant 254 : i32
    %7 = tpu.dynamic_rotate %3 by %c254_i32 dim 1 : vector<4x256xf32>, i32 -> vector<4x256xf32>
    %c253_i32 = arith.constant 253 : i32
    %8 = tpu.dynamic_rotate %3 by %c253_i32 dim 1 : vector<4x256xf32>, i32 -> vector<4x256xf32>
    %9 = tpu.concatenate %7, %8 in 0 : vector<4x256xf32>, vector<4x256xf32> -> vector<8x256xf32>
    %c8 = arith.constant 8 : index
    %c0_5 = arith.constant 0 : index
    %10 = vector.load %arg6[%c8, %c0_5] : memref<128x256xf32, #tpu.memory_space<vmem>>, vector<8x256xf32>
    tpu.vector_store %arg6[%c8, %c0_5], %9 {strides = array<i32>} : memref<128x256xf32, #tpu.memory_space<vmem>>, vector<8x256xf32>,
    %c252_i32 = arith.constant 252 : i32
    %11 = tpu.dynamic_rotate %3 by %c252_i32 dim 1 : vector<4x256xf32>, i32 -> vector<4x256xf32>
    %c240_i32 = arith.constant 240 : i32
    %12 = tpu.dynamic_rotate %3 by %c240_i32 dim 1 : vector<4x256xf32>, i32 -> vector<4x256xf32>
    %13 = tpu.concatenate %11, %12 in 0 : vector<4x256xf32>, vector<4x256xf32> -> vector<8x256xf32>
    %c16 = arith.constant 16 : index
    %c0_6 = arith.constant 0 : index
    %14 = vector.load %arg6[%c16, %c0_6] : memref<128x256xf32, #tpu.memory_space<vmem>>, vector<8x256xf32>
    tpu.vector_store %arg6[%c16, %c0_6], %13 {strides = array<i32>} : memref<128x256xf32, #tpu.memory_space<vmem>>, vector<8x256xf32>,
    %c239_i32 = arith.constant 239 : i32
    %15 = tpu.dynamic_rotate %3 by %c239_i32 dim 1 : vector<4x256xf32>, i32 -> vector<4x256xf32>
    %c238_i32 = arith.constant 238 : i32
    %16 = tpu.dynamic_rotate %3 by %c238_i32 dim 1 : vector<4x256xf32>, i32 -> vector<4x256xf32>
    %17 = tpu.concatenate %15, %16 in 0 : vector<4x256xf32>, vector<4x256xf32> -> vector<8x256xf32>
    %c24 = arith.constant 24 : index
    %c0_7 = arith.constant 0 : index
    %18 = vector.load %arg6[%c24, %c0_7] : memref<128x256xf32, #tpu.memory_space<vmem>>, vector<8x256xf32>
    tpu.vector_store %arg6[%c24, %c0_7], %17 {strides = array<i32>} : memref<128x256xf32, #tpu.memory_space<vmem>>, vector<8x256xf32>,
    %c237_i32 = arith.constant 237 : i32
    %19 = tpu.dynamic_rotate %3 by %c237_i32 dim 1 : vector<4x256xf32>, i32 -> vector<4x256xf32>
    %c236_i32 = arith.constant 236 : i32
    %20 = tpu.dynamic_rotate %3 by %c236_i32 dim 1 : vector<4x256xf32>, i32 -> vector<4x256xf32>
    %21 = tpu.concatenate %19, %20 in 0 : vector<4x256xf32>, vector<4x256xf32> -> vector<8x256xf32>
    %c32 = arith.constant 32 : index
    %c0_8 = arith.constant 0 : index
    %22 = vector.load %arg6[%c32, %c0_8] : memref<128x256xf32, #tpu.memory_space<vmem>>, vector<8x256xf32>
    tpu.vector_store %arg6[%c32, %c0_8], %21 {strides = array<i32>} : memref<128x256xf32, #tpu.memory_space<vmem>>, vector<8x256xf32>,
    %c224_i32 = arith.constant 224 : i32
    %23 = tpu.dynamic_rotate %3 by %c224_i32 dim 1 : vector<4x256xf32>, i32 -> vector<4x256xf32>
    %c223_i32 = arith.constant 223 : i32
    %24 = tpu.dynamic_rotate %3 by %c223_i32 dim 1 : vector<4x256xf32>, i32 -> vector<4x256xf32>
    %25 = tpu.concatenate %23, %24 in 0 : vector<4x256xf32>, vector<4x256xf32> -> vector<8x256xf32>
    %c40 = arith.constant 40 : index
    %c0_9 = arith.constant 0 : index
    %26 = vector.load %arg6[%c40, %c0_9] : memref<128x256xf32, #tpu.memory_space<vmem>>, vector<8x256xf32>
    tpu.vector_store %arg6[%c40, %c0_9], %25 {strides = array<i32>} : memref<128x256xf32, #tpu.memory_space<vmem>>, vector<8x256xf32>,
    %c222_i32 = arith.constant 222 : i32
    %27 = tpu.dynamic_rotate %3 by %c222_i32 dim 1 : vector<4x256xf32>, i32 -> vector<4x256xf32>
    %c221_i32 = arith.constant 221 : i32
    %28 = tpu.dynamic_rotate %3 by %c221_i32 dim 1 : vector<4x256xf32>, i32 -> vector<4x256xf32>
    %29 = tpu.concatenate %27, %28 in 0 : vector<4x256xf32>, vector<4x256xf32> -> vector<8x256xf32>
    %c48 = arith.constant 48 : index
    %c0_10 = arith.constant 0 : index
    %30 = vector.load %arg6[%c48, %c0_10] : memref<128x256xf32, #tpu.memory_space<vmem>>, vector<8x256xf32>
    tpu.vector_store %arg6[%c48, %c0_10], %29 {strides = array<i32>} : memref<128x256xf32, #tpu.memory_space<vmem>>, vector<8x256xf32>,
    %c220_i32 = arith.constant 220 : i32
    %31 = tpu.dynamic_rotate %3 by %c220_i32 dim 1 : vector<4x256xf32>, i32 -> vector<4x256xf32>
    %c208_i32 = arith.constant 208 : i32
    %32 = tpu.dynamic_rotate %3 by %c208_i32 dim 1 : vector<4x256xf32>, i32 -> vector<4x256xf32>
    %33 = tpu.concatenate %31, %32 in 0 : vector<4x256xf32>, vector<4x256xf32> -> vector<8x256xf32>
    %c56 = arith.constant 56 : index
    %c0_11 = arith.constant 0 : index
    %34 = vector.load %arg6[%c56, %c0_11] : memref<128x256xf32, #tpu.memory_space<vmem>>, vector<8x256xf32>
    tpu.vector_store %arg6[%c56, %c0_11], %33 {strides = array<i32>} : memref<128x256xf32, #tpu.memory_space<vmem>>, vector<8x256xf32>,
    %c207_i32 = arith.constant 207 : i32
    %35 = tpu.dynamic_rotate %3 by %c207_i32 dim 1 : vector<4x256xf32>, i32 -> vector<4x256xf32>
    %c206_i32 = arith.constant 206 : i32
    %36 = tpu.dynamic_rotate %3 by %c206_i32 dim 1 : vector<4x256xf32>, i32 -> vector<4x256xf32>
    %37 = tpu.concatenate %35, %36 in 0 : vector<4x256xf32>, vector<4x256xf32> -> vector<8x256xf32>
    %c64 = arith.constant 64 : index
    %c0_12 = arith.constant 0 : index
    %38 = vector.load %arg6[%c64, %c0_12] : memref<128x256xf32, #tpu.memory_space<vmem>>, vector<8x256xf32>
    tpu.vector_store %arg6[%c64, %c0_12], %37 {strides = array<i32>} : memref<128x256xf32, #tpu.memory_space<vmem>>, vector<8x256xf32>,
    %c205_i32 = arith.constant 205 : i32
    %39 = tpu.dynamic_rotate %3 by %c205_i32 dim 1 : vector<4x256xf32>, i32 -> vector<4x256xf32>
    %c204_i32 = arith.constant 204 : i32
    %40 = tpu.dynamic_rotate %3 by %c204_i32 dim 1 : vector<4x256xf32>, i32 -> vector<4x256xf32>
    %41 = tpu.concatenate %39, %40 in 0 : vector<4x256xf32>, vector<4x256xf32> -> vector<8x256xf32>
    %c72 = arith.constant 72 : index
    %c0_13 = arith.constant 0 : index
    %42 = vector.load %arg6[%c72, %c0_13] : memref<128x256xf32, #tpu.memory_space<vmem>>, vector<8x256xf32>
    tpu.vector_store %arg6[%c72, %c0_13], %41 {strides = array<i32>} : memref<128x256xf32, #tpu.memory_space<vmem>>, vector<8x256xf32>,
    %c192_i32 = arith.constant 192 : i32
    %43 = tpu.dynamic_rotate %3 by %c192_i32 dim 1 : vector<4x256xf32>, i32 -> vector<4x256xf32>
    %c191_i32 = arith.constant 191 : i32
    %44 = tpu.dynamic_rotate %3 by %c191_i32 dim 1 : vector<4x256xf32>, i32 -> vector<4x256xf32>
    %45 = tpu.concatenate %43, %44 in 0 : vector<4x256xf32>, vector<4x256xf32> -> vector<8x256xf32>
    %c80 = arith.constant 80 : index
    %c0_14 = arith.constant 0 : index
    %46 = vector.load %arg6[%c80, %c0_14] : memref<128x256xf32, #tpu.memory_space<vmem>>, vector<8x256xf32>
    tpu.vector_store %arg6[%c80, %c0_14], %45 {strides = array<i32>} : memref<128x256xf32, #tpu.memory_space<vmem>>, vector<8x256xf32>,
    %c190_i32 = arith.constant 190 : i32
    %47 = tpu.dynamic_rotate %3 by %c190_i32 dim 1 : vector<4x256xf32>, i32 -> vector<4x256xf32>
    %c189_i32 = arith.constant 189 : i32
    %48 = tpu.dynamic_rotate %3 by %c189_i32 dim 1 : vector<4x256xf32>, i32 -> vector<4x256xf32>
    %49 = tpu.concatenate %47, %48 in 0 : vector<4x256xf32>, vector<4x256xf32> -> vector<8x256xf32>
    %c88 = arith.constant 88 : index
    %c0_15 = arith.constant 0 : index
    %50 = vector.load %arg6[%c88, %c0_15] : memref<128x256xf32, #tpu.memory_space<vmem>>, vector<8x256xf32>
    tpu.vector_store %arg6[%c88, %c0_15], %49 {strides = array<i32>} : memref<128x256xf32, #tpu.memory_space<vmem>>, vector<8x256xf32>,
    %c188_i32 = arith.constant 188 : i32
    %51 = tpu.dynamic_rotate %3 by %c188_i32 dim 1 : vector<4x256xf32>, i32 -> vector<4x256xf32>
    %c96 = arith.constant 96 : index
    %c0_16 = arith.constant 0 : index
    %52 = vector.load %arg6[%c96, %c0_16] : memref<128x256xf32, #tpu.memory_space<vmem>>, vector<4x256xf32>
    tpu.vector_store %arg6[%c96, %c0_16], %51 {strides = array<i32>} : memref<128x256xf32, #tpu.memory_space<vmem>>, vector<4x256xf32>,
    %c0_17 = arith.constant 0 : index
    %c0_18 = arith.constant 0 : index
    %53 = vector.load %arg2[%c0_17, %c0_18] : memref<8x128xf32, #tpu.memory_space<vmem>>, vector<8x128xf32>
    %c0_19 = arith.constant 0 : index
    %c0_20 = arith.constant 0 : index
    %54 = vector.load %arg6[%c0_19, %c0_20] : memref<128x256xf32, #tpu.memory_space<vmem>>, vector<128x256xf32>
    %cst_21 = arith.constant dense<0.000000e+00> : vector<8x256xf32>
    %55 = tpu.matmul %53, %54, %cst_21 {dimension_numbers = #tpu.dot_dimension_numbers<[1], [0], [0], [1], [0, 0, 1, 1], [], []>} : vector<8x128xf32>, vector<128x256xf32>, vector<8x256xf32> -> vector<8x256xf32>
    %cst_22 = arith.constant 0.000000e+00 : f32
    %56 = vector.broadcast %cst_22 : f32 to vector<8x256xf32>
    %57 = arith.maximumf %55, %56 : vector<8x256xf32>
    %c0_23 = arith.constant 0 : index
    %c0_24 = arith.constant 0 : index
    %58 = vector.load %arg4[%c0_23, %c0_24] : memref<1x128xf32, #tpu.memory_space<vmem>>, vector<1x128xf32>
    %59 = vector.extract_strided_slice %57 {offsets = [0, 0], sizes = [1, 256], strides = [1, 1]} : vector<8x256xf32> to vector<1x256xf32>
    %c0_25 = arith.constant 0 : index
    %c0_26 = arith.constant 0 : index
    %c0_27 = arith.constant 0 : index
    %60 = vector.load %arg3[%c0_25, %c0_26, %c0_27] : memref<8x256x128xf32, #tpu.memory_space<vmem>>, vector<1x256x128xf32>
    %61 = vector.shape_cast %60 : vector<1x256x128xf32> to vector<256x128xf32>
    %cst_28 = arith.constant dense<0.000000e+00> : vector<1x128xf32>
    %62 = tpu.matmul %59, %61, %cst_28 {dimension_numbers = #tpu.dot_dimension_numbers<[1], [0], [0], [1], [0, 0, 1, 1], [], []>} : vector<1x256xf32>, vector<256x128xf32>, vector<1x128xf32> -> vector<1x128xf32>
    %63 = vector.extract_strided_slice %57 {offsets = [1, 0], sizes = [1, 256], strides = [1, 1]} : vector<8x256xf32> to vector<1x256xf32>
    %c1 = arith.constant 1 : index
    %c0_29 = arith.constant 0 : index
    %c0_30 = arith.constant 0 : index
    %64 = vector.load %arg3[%c1, %c0_29, %c0_30] : memref<8x256x128xf32, #tpu.memory_space<vmem>>, vector<1x256x128xf32>
    %65 = vector.shape_cast %64 : vector<1x256x128xf32> to vector<256x128xf32>
    %cst_31 = arith.constant dense<0.000000e+00> : vector<1x128xf32>
    %66 = tpu.matmul %63, %65, %cst_31 {dimension_numbers = #tpu.dot_dimension_numbers<[1], [0], [0], [1], [0, 0, 1, 1], [], []>} : vector<1x256xf32>, vector<256x128xf32>, vector<1x128xf32> -> vector<1x128xf32>
    %67 = vector.extract_strided_slice %57 {offsets = [2, 0], sizes = [1, 256], strides = [1, 1]} : vector<8x256xf32> to vector<1x256xf32>
    %c2 = arith.constant 2 : index
    %c0_32 = arith.constant 0 : index
    %c0_33 = arith.constant 0 : index
    %68 = vector.load %arg3[%c2, %c0_32, %c0_33] : memref<8x256x128xf32, #tpu.memory_space<vmem>>, vector<1x256x128xf32>
    %69 = vector.shape_cast %68 : vector<1x256x128xf32> to vector<256x128xf32>
    %cst_34 = arith.constant dense<0.000000e+00> : vector<1x128xf32>
    %70 = tpu.matmul %67, %69, %cst_34 {dimension_numbers = #tpu.dot_dimension_numbers<[1], [0], [0], [1], [0, 0, 1, 1], [], []>} : vector<1x256xf32>, vector<256x128xf32>, vector<1x128xf32> -> vector<1x128xf32>
    %71 = vector.extract_strided_slice %57 {offsets = [3, 0], sizes = [1, 256], strides = [1, 1]} : vector<8x256xf32> to vector<1x256xf32>
    %c3 = arith.constant 3 : index
    %c0_35 = arith.constant 0 : index
    %c0_36 = arith.constant 0 : index
    %72 = vector.load %arg3[%c3, %c0_35, %c0_36] : memref<8x256x128xf32, #tpu.memory_space<vmem>>, vector<1x256x128xf32>
    %73 = vector.shape_cast %72 : vector<1x256x128xf32> to vector<256x128xf32>
    %cst_37 = arith.constant dense<0.000000e+00> : vector<1x128xf32>
    %74 = tpu.matmul %71, %73, %cst_37 {dimension_numbers = #tpu.dot_dimension_numbers<[1], [0], [0], [1], [0, 0, 1, 1], [], []>} : vector<1x256xf32>, vector<256x128xf32>, vector<1x128xf32> -> vector<1x128xf32>
    %75 = vector.extract_strided_slice %57 {offsets = [4, 0], sizes = [1, 256], strides = [1, 1]} : vector<8x256xf32> to vector<1x256xf32>
    %c4 = arith.constant 4 : index
    %c0_38 = arith.constant 0 : index
    %c0_39 = arith.constant 0 : index
    %76 = vector.load %arg3[%c4, %c0_38, %c0_39] : memref<8x256x128xf32, #tpu.memory_space<vmem>>, vector<1x256x128xf32>
    %77 = vector.shape_cast %76 : vector<1x256x128xf32> to vector<256x128xf32>
    %cst_40 = arith.constant dense<0.000000e+00> : vector<1x128xf32>
    %78 = tpu.matmul %75, %77, %cst_40 {dimension_numbers = #tpu.dot_dimension_numbers<[1], [0], [0], [1], [0, 0, 1, 1], [], []>} : vector<1x256xf32>, vector<256x128xf32>, vector<1x128xf32> -> vector<1x128xf32>
    %79 = vector.extract_strided_slice %57 {offsets = [5, 0], sizes = [1, 256], strides = [1, 1]} : vector<8x256xf32> to vector<1x256xf32>
    %c5 = arith.constant 5 : index
    %c0_41 = arith.constant 0 : index
    %c0_42 = arith.constant 0 : index
    %80 = vector.load %arg3[%c5, %c0_41, %c0_42] : memref<8x256x128xf32, #tpu.memory_space<vmem>>, vector<1x256x128xf32>
    %81 = vector.shape_cast %80 : vector<1x256x128xf32> to vector<256x128xf32>
    %cst_43 = arith.constant dense<0.000000e+00> : vector<1x128xf32>
    %82 = tpu.matmul %79, %81, %cst_43 {dimension_numbers = #tpu.dot_dimension_numbers<[1], [0], [0], [1], [0, 0, 1, 1], [], []>} : vector<1x256xf32>, vector<256x128xf32>, vector<1x128xf32> -> vector<1x128xf32>
    %83 = vector.extract_strided_slice %57 {offsets = [6, 0], sizes = [1, 256], strides = [1, 1]} : vector<8x256xf32> to vector<1x256xf32>
    %c6 = arith.constant 6 : index
    %c0_44 = arith.constant 0 : index
    %c0_45 = arith.constant 0 : index
    %84 = vector.load %arg3[%c6, %c0_44, %c0_45] : memref<8x256x128xf32, #tpu.memory_space<vmem>>, vector<1x256x128xf32>
    %85 = vector.shape_cast %84 : vector<1x256x128xf32> to vector<256x128xf32>
    %cst_46 = arith.constant dense<0.000000e+00> : vector<1x128xf32>
    %86 = tpu.matmul %83, %85, %cst_46 {dimension_numbers = #tpu.dot_dimension_numbers<[1], [0], [0], [1], [0, 0, 1, 1], [], []>} : vector<1x256xf32>, vector<256x128xf32>, vector<1x128xf32> -> vector<1x128xf32>
    %87 = vector.extract_strided_slice %57 {offsets = [7, 0], sizes = [1, 256], strides = [1, 1]} : vector<8x256xf32> to vector<1x256xf32>
    %c7 = arith.constant 7 : index
    %c0_47 = arith.constant 0 : index
    %c0_48 = arith.constant 0 : index
    %88 = vector.load %arg3[%c7, %c0_47, %c0_48] : memref<8x256x128xf32, #tpu.memory_space<vmem>>, vector<1x256x128xf32>
    %89 = vector.shape_cast %88 : vector<1x256x128xf32> to vector<256x128xf32>
    %cst_49 = arith.constant dense<0.000000e+00> : vector<1x128xf32>
    %90 = tpu.matmul %87, %89, %cst_49 {dimension_numbers = #tpu.dot_dimension_numbers<[1], [0], [0], [1], [0, 0, 1, 1], [], []>} : vector<1x256xf32>, vector<256x128xf32>, vector<1x128xf32> -> vector<1x128xf32>
    %91 = tpu.concatenate %62, %66, %70, %74, %78, %82, %86, %90 in 0 : vector<1x128xf32>, vector<1x128xf32>, vector<1x128xf32>, vector<1x128xf32>, vector<1x128xf32>, vector<1x128xf32>, vector<1x128xf32>, vector<1x128xf32> -> vector<8x128xf32>
    %cst_50 = arith.constant dense<0.000000e+00> : vector<128xf32>
    %92 = vector.multi_reduction <add>, %91, %cst_50 [0] : vector<8x128xf32> to vector<128xf32>
    %93 = vector.shape_cast %92 : vector<128xf32> to vector<1x128xf32>
    %94 = arith.addf %93, %58 : vector<1x128xf32>
    %cst_51 = arith.constant dense<0xFF800000> : vector<1xf32>
    %95 = vector.multi_reduction <maximumf>, %94, %cst_51 [1] : vector<1x128xf32> to vector<1xf32>
    %96 = vector.shape_cast %95 : vector<1xf32> to vector<1x1xf32>
    %97 = vector.broadcast %96 : vector<1x1xf32> to vector<1x128xf32>
    %98 = arith.subf %94, %97 : vector<1x128xf32>
    %99 = math.exp %98 : vector<1x128xf32>
    %cst_52 = arith.constant dense<0.000000e+00> : vector<1xf32>
    %100 = vector.multi_reduction <add>, %99, %cst_52 [1] : vector<1x128xf32> to vector<1xf32>
    %101 = vector.shape_cast %100 : vector<1xf32> to vector<1x1xf32>
    %102 = vector.broadcast %101 : vector<1x1xf32> to vector<1x128xf32>
    %103 = arith.divf %99, %102 : vector<1x128xf32>
    %c0_53 = arith.constant 0 : index
    %c0_54 = arith.constant 0 : index
    %c0_55 = arith.constant 0 : index
    %104 = vector.load %arg5[%c0_53, %c0_54, %c0_55] : memref<1x1x128xf32, #tpu.memory_space<vmem>>, vector<1x1x128xf32>
    %105 = vector.shape_cast %104 : vector<1x1x128xf32> to vector<1x128xf32>
    %106 = vector.shape_cast %103 : vector<1x128xf32> to vector<1x1x128xf32>
    tpu.vector_store %arg5[%c0_53, %c0_54, %c0_55], %106 {strides = array<i32>} : memref<1x1x128xf32, #tpu.memory_space<vmem>>, vector<1x1x128xf32>,
    return
  }
  func.func @transform_0(%arg0: i32) -> (i32, i32, i32) {
    %c0_i32 = arith.constant 0 : i32
    %c0_i32_0 = arith.constant 0 : i32
    %c0_i32_1 = arith.constant 0 : i32
    return %arg0, %c0_i32, %c0_i32_0 : i32, i32, i32
  }
  func.func @transform_1(%arg0: i32) -> (i32, i32) {
    %c0_i32 = arith.constant 0 : i32
    %c0_i32_0 = arith.constant 0 : i32
    %c0_i32_1 = arith.constant 0 : i32
    return %c0_i32, %c0_i32_0 : i32, i32
  }
  func.func @transform_2(%arg0: i32) -> (i32, i32, i32) {
    %c0_i32 = arith.constant 0 : i32
    %c0_i32_0 = arith.constant 0 : i32
    %c0_i32_1 = arith.constant 0 : i32
    %c0_i32_2 = arith.constant 0 : i32
    return %c0_i32, %c0_i32_0, %c0_i32_1 : i32, i32, i32
  }
  func.func @transform_3(%arg0: i32) -> (i32, i32) {
    %c0_i32 = arith.constant 0 : i32
    %c0_i32_0 = arith.constant 0 : i32
    %c0_i32_1 = arith.constant 0 : i32
    return %c0_i32, %c0_i32_0 : i32, i32
  }
  func.func @transform_4(%arg0: i32) -> (i32, i32, i32) {
    %c0_i32 = arith.constant 0 : i32
    %c0_i32_0 = arith.constant 0 : i32
    %c0_i32_1 = arith.constant 0 : i32
    return %arg0, %c0_i32, %c0_i32_0 : i32, i32, i32
  }
}

</mosaic_0001>

<llo_original>
// kernel: forward.1
$region0: #{forward.1}
  #allocation0 [shape = 'u32[]', space=smem, size = 0x4, offset = 0x4, fixed_abs, tag = 'smem constant byte address 0x4 - core index']
  #allocation1 [shape = 'u32[72,128]{1,0:T(1,128)}', space=vmem, size = 0x9000, scoped, tag = 'internal scratch']
  #allocation2 [shape = 'f32[128,256]{1,0:T(8,128)}', space=vmem, size = 0x20000, scoped, tag = 'scratch operand']
  %s0 = inlined_call_operand.vmem [shape: f32[2,4,256], index: 0, kind: input, shape index: {}]
  %s1 = inlined_call_operand.vmem [shape: f32[8,128], index: 1, kind: input, shape index: {}]
  %s2 = inlined_call_operand.hbm [shape: f32[8,256,128], index: 2, kind: input, shape index: {}]
  %s3 = inlined_call_operand.vmem [shape: f32[1,128], index: 3, kind: input, shape index: {}]
  %s4 = inlined_call_operand.hbm [shape: f32[2,1,128], index: 4, kind: output, shape index: {}]
  %s5 = sld [smem:[#allocation0]]
  $region53: #{forward.1} parent=0
    _
  %s7 = ssub.s32 1, %s5
  %s8 = scalar_select 0, %s7, %s5
  $region1: #{forward.1} parent=0
    #allocation3 [shape = 'u8[1048576]{0}', space=vmem, size = 0x100000, scoped, tag = 'input window, operand 2, single buffered']
    #allocation4 [shape = 's32[2]{0}', space=sflag, size = 0x8, scoped, tag = 'scoped memory for forward.1']
    #allocation5 [shape = 's32[2]{0}', space=sflag, size = 0x8, scoped, tag = 'scoped memory for forward.1']
    #allocation6 [shape = 'u8[1024]{0}', space=vmem, size = 0x400, scoped, tag = 'output window, operand 0']
    %9 = vsyncpa [#allocation4], 0
    %10 = vsyncpa [#allocation5], 0
    %s11 = scalar_lea.sflag [#allocation5], 1
    %12 = vsyncpa %s11, 0
    loop: start=0, step=1, limit=4
    $region2: #{forward.1} parent=1 // loop_pre_header
      _
    $region3: #{forward.1} parent=1 // loop_header
      %s14 = sphi 0, %s18
      %p15 = scmp.ge.s32.totalorder %s14, 4
      %s24 = sphi 0, %s26
      %s27 = sphi 0, %s24
      %s28 = sphi 0, %s27
      %s44 = sphi 0, %s28
      %s48 = sphi 0, %s48
      %s50 = sphi 0, %s48
      %s51 = sphi 0, %s50
      %s65 = sphi 0, %s51
      %s69 = sphi 0, %s69
      %s71 = sphi 0, %s69
      %s72 = sphi 0, %s71
      %s86 = sphi 0, %s72
      %s90 = sphi 0, %s90
      %s92 = sphi 0, %s90
      %s93 = sphi 0, %s92
      %s107 = sphi 0, %s93
      %s113 = sphi 0, %s115
      %s116 = sphi 0, %s113
      %s117 = sphi 0, %s116
      %s133 = sphi 0, %s117
    $region4: #{forward.1} parent=1 // loop_header_branch
      %17 = sbr.rel (%p15) target = $region8
    $region5: #{forward.1} parent=1 // loop_body
      %s19 = ssub.s32 %s14, 1
      %s20 = ssub.s32 %s14, 2
      %s21 = sadd.s32 %s14, 1
      %s22 = ssub.s32 %s14, %s21
      %p23 = scmp.eq.s32.totalorder %s22, 0
      %s25 = sadd.s32 %s24, 1
      %s26 = scalar_select %p23, %s24, %s25
      %p29 = pneg %p23
      %p30 = scmp.eq.s32.totalorder %s14, 1
      %p31 = por %p29, %p30
      %p32 = scmp.ne.s32.totalorder %s24, %s27
      %p33 = scmp.eq.s32.totalorder %s14, 0
      %p34 = por %p32, %p33
      %p35 = scmp.ne.s32.totalorder %s24, %s27
      %p36 = scmp.eq.s32.totalorder %s19, 1
      %p37 = por %p35, %p36
      %p38 = scmp.ne.s32.totalorder %s27, %s28
      %p39 = scmp.eq.s32.totalorder %s19, 0
      %p40 = por %p38, %p39
      %p41 = scmp.ne.s32.totalorder %s27, %s28
      %p42 = scmp.eq.s32.totalorder %s20, 1
      %p43 = por %p41, %p42
      %p45 = scmp.ne.s32.totalorder %s28, %s44
      %p46 = scmp.eq.s32.totalorder %s20, 0
      %p47 = por %p45, %p46
      %s49 = sadd.s32 %s48, 1
      %p52 = scmp.eq.s32.totalorder %s14, 1
      %p53 = scmp.ne.s32.totalorder %s48, %s50
      %p54 = scmp.eq.s32.totalorder %s14, 0
      %p55 = por %p53, %p54
      %p56 = scmp.ne.s32.totalorder %s48, %s50
      %p57 = scmp.eq.s32.totalorder %s19, 1
      %p58 = por %p56, %p57
      %p59 = scmp.ne.s32.totalorder %s50, %s51
      %p60 = scmp.eq.s32.totalorder %s19, 0
      %p61 = por %p59, %p60
      %p62 = scmp.ne.s32.totalorder %s50, %s51
      %p63 = scmp.eq.s32.totalorder %s20, 1
      %p64 = por %p62, %p63
      %p66 = scmp.ne.s32.totalorder %s51, %s65
      %p67 = scmp.eq.s32.totalorder %s20, 0
      %p68 = por %p66, %p67
      %s70 = sadd.s32 %s69, 1
      %p73 = scmp.eq.s32.totalorder %s14, 1
      %p74 = scmp.ne.s32.totalorder %s69, %s71
      %p75 = scmp.eq.s32.totalorder %s14, 0
      %p76 = por %p74, %p75
      %p77 = scmp.ne.s32.totalorder %s69, %s71
      %p78 = scmp.eq.s32.totalorder %s19, 1
      %p79 = por %p77, %p78
      %p80 = scmp.ne.s32.totalorder %s71, %s72
      %p81 = scmp.eq.s32.totalorder %s19, 0
      %p82 = por %p80, %p81
      %p83 = scmp.ne.s32.totalorder %s71, %s72
      %p84 = scmp.eq.s32.totalorder %s20, 1
      %p85 = por %p83, %p84
      %p87 = scmp.ne.s32.totalorder %s72, %s86
      %p88 = scmp.eq.s32.totalorder %s20, 0
      %p89 = por %p87, %p88
      %s91 = sadd.s32 %s90, 1
      %p94 = scmp.eq.s32.totalorder %s14, 1
      %p95 = scmp.ne.s32.totalorder %s90, %s92
      %p96 = scmp.eq.s32.totalorder %s14, 0
      %p97 = por %p95, %p96
      %p98 = scmp.ne.s32.totalorder %s90, %s92
      %p99 = scmp.eq.s32.totalorder %s19, 1
      %p100 = por %p98, %p99
      %p101 = scmp.ne.s32.totalorder %s92, %s93
      %p102 = scmp.eq.s32.totalorder %s19, 0
      %p103 = por %p101, %p102
      %p104 = scmp.ne.s32.totalorder %s92, %s93
      %p105 = scmp.eq.s32.totalorder %s20, 1
      %p106 = por %p104, %p105
      %p108 = scmp.ne.s32.totalorder %s93, %s107
      %p109 = scmp.eq.s32.totalorder %s20, 0
      %p110 = por %p108, %p109
      %s111 = ssub.s32 %s14, %s21
      %p112 = scmp.eq.s32.totalorder %s111, 0
      %s114 = sadd.s32 %s113, 1
      %s115 = scalar_select %p112, %s113, %s114
      %p118 = pneg %p112
      %p119 = scmp.eq.s32.totalorder %s14, 1
      %p120 = por %p118, %p119
      %p121 = scmp.ne.s32.totalorder %s113, %s116
      %p122 = scmp.eq.s32.totalorder %s14, 0
      %p123 = por %p121, %p122
      %p124 = scmp.ne.s32.totalorder %s113, %s116
      %p125 = scmp.eq.s32.totalorder %s19, 1
      %p126 = por %p124, %p125
      %p127 = scmp.ne.s32.totalorder %s116, %s117
      %p128 = scmp.eq.s32.totalorder %s19, 0
      %p129 = por %p127, %p128
      %p130 = scmp.ne.s32.totalorder %s116, %s117
      %p131 = scmp.eq.s32.totalorder %s20, 1
      %p132 = por %p130, %p131
      %p134 = scmp.ne.s32.totalorder %s117, %s133
      %p135 = scmp.eq.s32.totalorder %s20, 0
      %p136 = por %p134, %p135
      %p137 = scmp.le.s32.totalorder 1, %s14
      %p138 = scmp.lt.s32.totalorder %s14, 3
      %p139 = pnand %p137, %p138
      %p140 = pneg %p139
      // Predicated region
      $region9: #{forward.1} parent=5 // pred_check
        _
      $region10: #{forward.1} parent=5 // pred_check_branch
        %142 = sbr.rel (%p139) target = $region12
      $region11: #{forward.1} parent=5 // pred_region
        %s143 = ssub.s32 %s14, 1
        // Predicated region
        $region13: #{forward.1} parent=11 // pred_check
          %p144 = pneg %p61
        $region14: #{forward.1} parent=11 // pred_check_branch
          %146 = sbr.rel (%p144) target = $region16
        $region15: #{forward.1} parent=11 // pred_region
          _
        $region16: #{forward.1} parent=11 // pred_fallthru
          _
        // Predicated region
        $region17: #{forward.1} parent=11 // pred_check
          %p147 = pneg %p82
        $region18: #{forward.1} parent=11 // pred_check_branch
          %149 = sbr.rel (%p147) target = $region20
        $region19: #{forward.1} parent=11 // pred_region
          %151 = vsyncadd [#allocation4], 0
          %s152 = sshll.u32 %s2, 4
          %s153 = int_to_ptr.hbm [resolvable:$true] %s152
          %s154 = sshll.u32 [#allocation3], 4
          %s155 = int_to_ptr.vmem [resolvable:$true] %s154
          %160 = dma.hbm_to_vmem [thread:$0]  %s153, 32768, %s155, [#allocation4], 128, 128, 8
        $region20: #{forward.1} parent=11 // pred_fallthru
          _
        // Predicated region
        $region21: #{forward.1} parent=11 // pred_check
          %p161 = pneg %p103
        $region22: #{forward.1} parent=11 // pred_check_branch
          %163 = sbr.rel (%p161) target = $region24
        $region23: #{forward.1} parent=11 // pred_region
          _
        $region24: #{forward.1} parent=11 // pred_fallthru
          _
      $region12: #{forward.1} parent=5 // pred_fallthru
        _
      %p164 = scmp.lt.s32.totalorder %s14, 2
      // Predicated region
      $region25: #{forward.1} parent=5 // pred_check
        %p165 = pneg %p164
      $region26: #{forward.1} parent=5 // pred_check_branch
        %167 = sbr.rel (%p165) target = $region28
      $region27: #{forward.1} parent=5 // pred_region
        // Predicated region
        $region29: #{forward.1} parent=27 // pred_check
          %p168 = pneg %p34
        $region30: #{forward.1} parent=27 // pred_check_branch
          %170 = sbr.rel (%p168) target = $region32
        $region31: #{forward.1} parent=27 // pred_region
          %p171 = scmp.lt.s32.totalorder %s14, 1
          %s172 = scalar_select %p171, %s14, 1
          %s173 = smul.addr %s172, 2
          %s174 = smul.addr %s173, 4
          %s175 = scalar_lea.vmem %s0, %s174
        $region32: #{forward.1} parent=27 // pred_fallthru
          _
      $region28: #{forward.1} parent=5 // pred_fallthru
        _
      %p176 = scmp.le.s32.totalorder 1, %s14
      %p177 = scmp.lt.s32.totalorder %s14, 3
      %p178 = pnand %p176, %p177
      %p179 = pneg %p178
      // Predicated region
      $region33: #{forward.1} parent=5 // pred_check
        _
      $region34: #{forward.1} parent=5 // pred_check_branch
        %181 = sbr.rel (%p178) target = $region36
      $region35: #{forward.1} parent=5 // pred_region
        %s182 = ssub.s32 %s14, 1
        // Predicated region
        $region37: #{forward.1} parent=35 // pred_check
          %p183 = pneg %p82
        $region38: #{forward.1} parent=35 // pred_check_branch
          %185 = sbr.rel (%p183) target = $region40
        $region39: #{forward.1} parent=35 // pred_region
          %187 = dma.done [#allocation4], 32768
        $region40: #{forward.1} parent=35 // pred_fallthru
          _
        %p188 = scmp.lt.s32.totalorder %s19, 1
        %s189 = scalar_select %p188, %s19, 1
        %s190 = smul.addr %s189, 2
        %s191 = smul.addr %s190, 4
        %s192 = scalar_lea.vmem %s0, %s191
        %p193 = pneg %p40
        %p194 = pneg %p37
        %p195 = pneg %p61
        %p196 = pneg %p58
        %p197 = pneg %p82
        %p198 = pneg %p79
        %p199 = pneg %p103
        %p200 = pneg %p100
        %p201 = pneg %p129
        %p202 = pneg %p126
        %s203 = sand.u32 %s116, 1
        %s204 = scalar_lea.sflag [#allocation5], %s203
        %s205 = sand.u32 %s116, 1
        %s206 = scalar_lea.vmem [#allocation6], %s205
        %p207 = scmp.lt.s32.totalorder %s19, 1
        %s208 = scalar_select %p207, %s19, 1
        %s209 = smul.addr %s208, 2
        %s210 = smul.addr %s209, 4
        %s211 = scalar_lea.vmem %s0, %s210
        %212 = vst [vmem:[#allocation2 + $0xc0] sm:$0xf0] 0.0
        %213 = vst [vmem:[#allocation2 + $0xc8] sm:$0xf0] 0.0
        %214 = vst [vmem:[#allocation2 + $0xd0] sm:$0xff] 0.0
        %215 = vst [vmem:[#allocation2 + $0xd8] sm:$0xff] 0.0
        %216 = vst [vmem:[#allocation2 + $0xe0] sm:$0xff] 0.0
        %217 = vst [vmem:[#allocation2 + $0xe8] sm:$0xff] 0.0
        %218 = vst [vmem:[#allocation2 + $0xf0] sm:$0xff] 0.0
        %219 = vst [vmem:[#allocation2 + $0xf8] sm:$0xff] 0.0
        %v220 = vld [vmem:[%s211] sm:$0xff]
        %222 = vst [vmem:[#allocation1] ss:$2 sm:$0xff] %v220
        %v223 = vld.sshfl [vmem:[#allocation1] sm:$0xff pattern:$0x75316420]
        %v224 = vld.sshfl [vmem:[#allocation1 + $0x8] sm:$0xff pattern:$0x75316420]
        %227 = vrot.lane.b32.xlu0 %v223, 127
        %v228 = vpop.permute.xlu0 %227
        %229 = vrot.lane.b32.xlu0 %v224, 127
        %v230 = vpop.permute.xlu0 %229
        %v231 = vlaneseq
        %v232 = vand.u32 %v231, 127
        %vm233 = vcmp.lt.s32.totalorder %v232, 127
        %v234 = vsel %vm233, %v228, %v230
        %v235 = vsel %vm233, %v230, %v228
        %236 = vst [vmem:[#allocation1] ss:$2 sm:$0xff] %v220
        %v237 = vld.sshfl [vmem:[#allocation1] sm:$0xff pattern:$0x75316420]
        %v238 = vld.sshfl [vmem:[#allocation1 + $0x8] sm:$0xff pattern:$0x75316420]
        %v243 = vrot.slane %v234, 4
        %v244 = vrot.slane %v235, 4
        %vm247 = vcmask 1043456
        %v248 = vsel %vm247, %v237, %v243
        %v249 = vsel %vm247, %v238, %v244
        %250 = vst [vmem:[#allocation2] sm:$0xff] %v248
        %251 = vst [vmem:[#allocation2 + $0x8] sm:$0xff] %v249
        %252 = vst [vmem:[#allocation1] ss:$2 sm:$0xff] %v220
        %v253 = vld.sshfl [vmem:[#allocation1] sm:$0xff pattern:$0x75316420]
        %v254 = vld.sshfl [vmem:[#allocation1 + $0x8] sm:$0xff pattern:$0x75316420]
        %257 = vrot.lane.b32.xlu0 %v253, 126
        %v258 = vpop.permute.xlu0 %257
        %259 = vrot.lane.b32.xlu0 %v254, 126
        %v260 = vpop.permute.xlu0 %259
        %vm261 = vcmp.lt.s32.totalorder %v232, 126
        %v262 = vsel %vm261, %v258, %v260
        %v263 = vsel %vm261, %v260, %v258
        %264 = vst [vmem:[#allocation1] ss:$2 sm:$0xff] %v220
        %v265 = vld.sshfl [vmem:[#allocation1] sm:$0xff pattern:$0x75316420]
        %v266 = vld.sshfl [vmem:[#allocation1 + $0x8] sm:$0xff pattern:$0x75316420]
        %269 = vrot.lane.b32.xlu0 %v265, 125
        %v270 = vpop.permute.xlu0 %269
        %271 = vrot.lane.b32.xlu0 %v266, 125
        %v272 = vpop.permute.xlu0 %271
        %vm273 = vcmp.lt.s32.totalorder %v232, 125
        %v274 = vsel %vm273, %v270, %v272
        %v275 = vsel %vm273, %v272, %v270
        %v278 = vrot.slane %v274, 4
        %v279 = vrot.slane %v275, 4
        %v282 = vsel %vm247, %v262, %v278
        %v283 = vsel %vm247, %v263, %v279
        %284 = vst [vmem:[#allocation2 + $0x10] sm:$0xff] %v282
        %285 = vst [vmem:[#allocation2 + $0x18] sm:$0xff] %v283
        %286 = vst [vmem:[#allocation1] ss:$2 sm:$0xff] %v220
        %v287 = vld.sshfl [vmem:[#allocation1] sm:$0xff pattern:$0x75316420]
        %v288 = vld.sshfl [vmem:[#allocation1 + $0x8] sm:$0xff pattern:$0x75316420]
        %291 = vrot.lane.b32.xlu0 %v287, 124
        %v292 = vpop.permute.xlu0 %291
        %293 = vrot.lane.b32.xlu0 %v288, 124
        %v294 = vpop.permute.xlu0 %293
        %vm295 = vcmp.lt.s32.totalorder %v232, 124
        %v296 = vsel %vm295, %v292, %v294
        %v297 = vsel %vm295, %v294, %v292
        %298 = vst [vmem:[#allocation1] ss:$2 sm:$0xff] %v220
        %v299 = vld.sshfl [vmem:[#allocation1] sm:$0xff pattern:$0x75316420]
        %v300 = vld.sshfl [vmem:[#allocation1 + $0x8] sm:$0xff pattern:$0x75316420]
        %303 = vrot.lane.b32.xlu0 %v299, 112
        %v304 = vpop.permute.xlu0 %303
        %305 = vrot.lane.b32.xlu0 %v300, 112
        %v306 = vpop.permute.xlu0 %305
        %vm307 = vcmp.lt.s32.totalorder %v232, 112
        %v308 = vsel %vm307, %v304, %v306
        %v309 = vsel %vm307, %v306, %v304
        %v312 = vrot.slane %v308, 4
        %v313 = vrot.slane %v309, 4
        %v316 = vsel %vm247, %v296, %v312
        %v317 = vsel %vm247, %v297, %v313
        %318 = vst [vmem:[#allocation2 + $0x20] sm:$0xff] %v316
        %319 = vst [vmem:[#allocation2 + $0x28] sm:$0xff] %v317
        %320 = vst [vmem:[#allocation1] ss:$2 sm:$0xff] %v220
        %v321 = vld.sshfl [vmem:[#allocation1] sm:$0xff pattern:$0x75316420]
        %v322 = vld.sshfl [vmem:[#allocation1 + $0x8] sm:$0xff pattern:$0x75316420]
        %325 = vrot.lane.b32.xlu0 %v321, 111
        %v326 = vpop.permute.xlu0 %325
        %327 = vrot.lane.b32.xlu0 %v322, 111
        %v328 = vpop.permute.xlu0 %327
        %vm329 = vcmp.lt.s32.totalorder %v232, 111
        %v330 = vsel %vm329, %v326, %v328
        %v331 = vsel %vm329, %v328, %v326
        %332 = vst [vmem:[#allocation1] ss:$2 sm:$0xff] %v220
        %v333 = vld.sshfl [vmem:[#allocation1] sm:$0xff pattern:$0x75316420]
        %v334 = vld.sshfl [vmem:[#allocation1 + $0x8] sm:$0xff pattern:$0x75316420]
        %337 = vrot.lane.b32.xlu0 %v333, 110
        %v338 = vpop.permute.xlu0 %337
        %339 = vrot.lane.b32.xlu0 %v334, 110
        %v340 = vpop.permute.xlu0 %339
        %vm341 = vcmp.lt.s32.totalorder %v232, 110
        %v342 = vsel %vm341, %v338, %v340
        %v343 = vsel %vm341, %v340, %v338
        %v346 = vrot.slane %v342, 4
        %v347 = vrot.slane %v343, 4
        %v350 = vsel %vm247, %v330, %v346
        %v351 = vsel %vm247, %v331, %v347
        %352 = vst [vmem:[#allocation2 + $0x30] sm:$0xff] %v350
        %353 = vst [vmem:[#allocation2 + $0x38] sm:$0xff] %v351
        %354 = vst [vmem:[#allocation1] ss:$2 sm:$0xff] %v220
        %v355 = vld.sshfl [vmem:[#allocation1] sm:$0xff pattern:$0x75316420]
        %v356 = vld.sshfl [vmem:[#allocation1 + $0x8] sm:$0xff pattern:$0x75316420]
        %359 = vrot.lane.b32.xlu0 %v355, 109
        %v360 = vpop.permute.xlu0 %359
        %361 = vrot.lane.b32.xlu0 %v356, 109
        %v362 = vpop.permute.xlu0 %361
        %vm363 = vcmp.lt.s32.totalorder %v232, 109
        %v364 = vsel %vm363, %v360, %v362
        %v365 = vsel %vm363, %v362, %v360
        %366 = vst [vmem:[#allocation1] ss:$2 sm:$0xff] %v220
        %v367 = vld.sshfl [vmem:[#allocation1] sm:$0xff pattern:$0x75316420]
        %v368 = vld.sshfl [vmem:[#allocation1 + $0x8] sm:$0xff pattern:$0x75316420]
        %371 = vrot.lane.b32.xlu0 %v367, 108
        %v372 = vpop.permute.xlu0 %371
        %373 = vrot.lane.b32.xlu0 %v368, 108
        %v374 = vpop.permute.xlu0 %373
        %vm375 = vcmp.lt.s32.totalorder %v232, 108
        %v376 = vsel %vm375, %v372, %v374
        %v377 = vsel %vm375, %v374, %v372
        %v380 = vrot.slane %v376, 4
        %v381 = vrot.slane %v377, 4
        %v384 = vsel %vm247, %v364, %v380
        %v385 = vsel %vm247, %v365, %v381
        %386 = vst [vmem:[#allocation2 + $0x40] sm:$0xff] %v384
        %387 = vst [vmem:[#allocation2 + $0x48] sm:$0xff] %v385
        %388 = vst [vmem:[#allocation1] ss:$2 sm:$0xff] %v220
        %v389 = vld.sshfl [vmem:[#allocation1] sm:$0xff pattern:$0x75316420]
        %v390 = vld.sshfl [vmem:[#allocation1 + $0x8] sm:$0xff pattern:$0x75316420]
        %393 = vrot.lane.b32.xlu0 %v389, 96
        %v394 = vpop.permute.xlu0 %393
        %395 = vrot.lane.b32.xlu0 %v390, 96
        %v396 = vpop.permute.xlu0 %395
        %vm397 = vcmp.lt.s32.totalorder %v232, 96
        %v398 = vsel %vm397, %v394, %v396
        %v399 = vsel %vm397, %v396, %v394
        %400 = vst [vmem:[#allocation1] ss:$2 sm:$0xff] %v220
        %v401 = vld.sshfl [vmem:[#allocation1] sm:$0xff pattern:$0x75316420]
        %v402 = vld.sshfl [vmem:[#allocation1 + $0x8] sm:$0xff pattern:$0x75316420]
        %405 = vrot.lane.b32.xlu0 %v401, 95
        %v406 = vpop.permute.xlu0 %405
        %407 = vrot.lane.b32.xlu0 %v402, 95
        %v408 = vpop.permute.xlu0 %407
        %vm409 = vcmp.lt.s32.totalorder %v232, 95
        %v410 = vsel %vm409, %v406, %v408
        %v411 = vsel %vm409, %v408, %v406
        %v414 = vrot.slane %v410, 4
        %v415 = vrot.slane %v411, 4
        %v418 = vsel %vm247, %v398, %v414
        %v419 = vsel %vm247, %v399, %v415
        %420 = vst [vmem:[#allocation2 + $0x50] sm:$0xff] %v418
        %421 = vst [vmem:[#allocation2 + $0x58] sm:$0xff] %v419
        %422 = vst [vmem:[#allocation1] ss:$2 sm:$0xff] %v220
        %v423 = vld.sshfl [vmem:[#allocation1] sm:$0xff pattern:$0x75316420]
        %v424 = vld.sshfl [vmem:[#allocation1 + $0x8] sm:$0xff pattern:$0x75316420]
        %427 = vrot.lane.b32.xlu0 %v423, 94
        %v428 = vpop.permute.xlu0 %427
        %429 = vrot.lane.b32.xlu0 %v424, 94
        %v430 = vpop.permute.xlu0 %429
        %vm431 = vcmp.lt.s32.totalorder %v232, 94
        %v432 = vsel %vm431, %v428, %v430
        %v433 = vsel %vm431, %v430, %v428
        %434 = vst [vmem:[#allocation1] ss:$2 sm:$0xff] %v220
        %v435 = vld.sshfl [vmem:[#allocation1] sm:$0xff pattern:$0x75316420]
        %v436 = vld.sshfl [vmem:[#allocation1 + $0x8] sm:$0xff pattern:$0x75316420]
        %439 = vrot.lane.b32.xlu0 %v435, 93
        %v440 = vpop.permute.xlu0 %439
        %441 = vrot.lane.b32.xlu0 %v436, 93
        %v442 = vpop.permute.xlu0 %441
        %vm443 = vcmp.lt.s32.totalorder %v232, 93
        %v444 = vsel %vm443, %v440, %v442
        %v445 = vsel %vm443, %v442, %v440
        %v448 = vrot.slane %v444, 4
        %v449 = vrot.slane %v445, 4
        %v452 = vsel %vm247, %v432, %v448
        %v453 = vsel %vm247, %v433, %v449
        %454 = vst [vmem:[#allocation2 + $0x60] sm:$0xff] %v452
        %455 = vst [vmem:[#allocation2 + $0x68] sm:$0xff] %v453
        %456 = vst [vmem:[#allocation1] ss:$2 sm:$0xff] %v220
        %v457 = vld.sshfl [vmem:[#allocation1] sm:$0xff pattern:$0x75316420]
        %v458 = vld.sshfl [vmem:[#allocation1 + $0x8] sm:$0xff pattern:$0x75316420]
        %461 = vrot.lane.b32.xlu0 %v457, 92
        %v462 = vpop.permute.xlu0 %461
        %463 = vrot.lane.b32.xlu0 %v458, 92
        %v464 = vpop.permute.xlu0 %463
        %vm465 = vcmp.lt.s32.totalorder %v232, 92
        %v466 = vsel %vm465, %v462, %v464
        %v467 = vsel %vm465, %v464, %v462
        %468 = vst [vmem:[#allocation1] ss:$2 sm:$0xff] %v220
        %v469 = vld.sshfl [vmem:[#allocation1] sm:$0xff pattern:$0x75316420]
        %v470 = vld.sshfl [vmem:[#allocation1 + $0x8] sm:$0xff pattern:$0x75316420]
        %473 = vrot.lane.b32.xlu0 %v469, 80
        %v474 = vpop.permute.xlu0 %473
        %475 = vrot.lane.b32.xlu0 %v470, 80
        %v476 = vpop.permute.xlu0 %475
        %vm477 = vcmp.lt.s32.totalorder %v232, 80
        %v478 = vsel %vm477, %v474, %v476
        %v479 = vsel %vm477, %v476, %v474
        %v482 = vrot.slane %v478, 4
        %v483 = vrot.slane %v479, 4
        %v486 = vsel %vm247, %v466, %v482
        %v487 = vsel %vm247, %v467, %v483
        %488 = vst [vmem:[#allocation2 + $0x70] sm:$0xff] %v486
        %489 = vst [vmem:[#allocation2 + $0x78] sm:$0xff] %v487
        %490 = vst [vmem:[#allocation1] ss:$2 sm:$0xff] %v220
        %v491 = vld.sshfl [vmem:[#allocation1] sm:$0xff pattern:$0x75316420]
        %v492 = vld.sshfl [vmem:[#allocation1 + $0x8] sm:$0xff pattern:$0x75316420]
        %495 = vrot.lane.b32.xlu0 %v491, 79
        %v496 = vpop.permute.xlu0 %495
        %497 = vrot.lane.b32.xlu0 %v492, 79
        %v498 = vpop.permute.xlu0 %497
        %vm499 = vcmp.lt.s32.totalorder %v232, 79
        %v500 = vsel %vm499, %v496, %v498
        %v501 = vsel %vm499, %v498, %v496
        %502 = vst [vmem:[#allocation1] ss:$2 sm:$0xff] %v220
        %v503 = vld.sshfl [vmem:[#allocation1] sm:$0xff pattern:$0x75316420]
        %v504 = vld.sshfl [vmem:[#allocation1 + $0x8] sm:$0xff pattern:$0x75316420]
        %507 = vrot.lane.b32.xlu0 %v503, 78
        %v508 = vpop.permute.xlu0 %507
        %509 = vrot.lane.b32.xlu0 %v504, 78
        %v510 = vpop.permute.xlu0 %509
        %vm511 = vcmp.lt.s32.totalorder %v232, 78
        %v512 = vsel %vm511, %v508, %v510
        %v513 = vsel %vm511, %v510, %v508
        %v516 = vrot.slane %v512, 4
        %v517 = vrot.slane %v513, 4
        %v520 = vsel %vm247, %v500, %v516
        %v521 = vsel %vm247, %v501, %v517
        %522 = vst [vmem:[#allocation2 + $0x80] sm:$0xff] %v520
        %523 = vst [vmem:[#allocation2 + $0x88] sm:$0xff] %v521
        %524 = vst [vmem:[#allocation1] ss:$2 sm:$0xff] %v220
        %v525 = vld.sshfl [vmem:[#allocation1] sm:$0xff pattern:$0x75316420]
        %v526 = vld.sshfl [vmem:[#allocation1 + $0x8] sm:$0xff pattern:$0x75316420]
        %529 = vrot.lane.b32.xlu0 %v525, 77
        %v530 = vpop.permute.xlu0 %529
        %531 = vrot.lane.b32.xlu0 %v526, 77
        %v532 = vpop.permute.xlu0 %531
        %vm533 = vcmp.lt.s32.totalorder %v232, 77
        %v534 = vsel %vm533, %v530, %v532
        %v535 = vsel %vm533, %v532, %v530
        %536 = vst [vmem:[#allocation1] ss:$2 sm:$0xff] %v220
        %v537 = vld.sshfl [vmem:[#allocation1] sm:$0xff pattern:$0x75316420]
        %v538 = vld.sshfl [vmem:[#allocation1 + $0x8] sm:$0xff pattern:$0x75316420]
        %541 = vrot.lane.b32.xlu0 %v537, 76
        %v542 = vpop.permute.xlu0 %541
        %543 = vrot.lane.b32.xlu0 %v538, 76
        %v544 = vpop.permute.xlu0 %543
        %vm545 = vcmp.lt.s32.totalorder %v232, 76
        %v546 = vsel %vm545, %v542, %v544
        %v547 = vsel %vm545, %v544, %v542
        %v550 = vrot.slane %v546, 4
        %v551 = vrot.slane %v547, 4
        %v554 = vsel %vm247, %v534, %v550
        %v555 = vsel %vm247, %v535, %v551
        %556 = vst [vmem:[#allocation2 + $0x90] sm:$0xff] %v554
        %557 = vst [vmem:[#allocation2 + $0x98] sm:$0xff] %v555
        %558 = vst [vmem:[#allocation1] ss:$2 sm:$0xff] %v220
        %v559 = vld.sshfl [vmem:[#allocation1] sm:$0xff pattern:$0x75316420]
        %v560 = vld.sshfl [vmem:[#allocation1 + $0x8] sm:$0xff pattern:$0x75316420]
        %563 = vrot.lane.b32.xlu0 %v559, 64
        %v564 = vpop.permute.xlu0 %563
        %565 = vrot.lane.b32.xlu0 %v560, 64
        %v566 = vpop.permute.xlu0 %565
        %vm567 = vcmp.lt.s32.totalorder %v232, 64
        %v568 = vsel %vm567, %v564, %v566
        %v569 = vsel %vm567, %v566, %v564
        %570 = vst [vmem:[#allocation1] ss:$2 sm:$0xff] %v220
        %v571 = vld.sshfl [vmem:[#allocation1] sm:$0xff pattern:$0x75316420]
        %v572 = vld.sshfl [vmem:[#allocation1 + $0x8] sm:$0xff pattern:$0x75316420]
        %575 = vrot.lane.b32.xlu0 %v571, 63
        %v576 = vpop.permute.xlu0 %575
        %577 = vrot.lane.b32.xlu0 %v572, 63
        %v578 = vpop.permute.xlu0 %577
        %vm579 = vcmp.lt.s32.totalorder %v232, 63
        %v580 = vsel %vm579, %v576, %v578
        %v581 = vsel %vm579, %v578, %v576
        %v584 = vrot.slane %v580, 4
        %v585 = vrot.slane %v581, 4
        %v588 = vsel %vm247, %v568, %v584
        %v589 = vsel %vm247, %v569, %v585
        %590 = vst [vmem:[#allocation2 + $0xa0] sm:$0xff] %v588
        %591 = vst [vmem:[#allocation2 + $0xa8] sm:$0xff] %v589
        %592 = vst [vmem:[#allocation1] ss:$2 sm:$0xff] %v220
        %v593 = vld.sshfl [vmem:[#allocation1] sm:$0xff pattern:$0x75316420]
        %v594 = vld.sshfl [vmem:[#allocation1 + $0x8] sm:$0xff pattern:$0x75316420]
        %597 = vrot.lane.b32.xlu0 %v593, 62
        %v598 = vpop.permute.xlu0 %597
        %599 = vrot.lane.b32.xlu0 %v594, 62
        %v600 = vpop.permute.xlu0 %599
        %vm601 = vcmp.lt.s32.totalorder %v232, 62
        %v602 = vsel %vm601, %v598, %v600
        %v603 = vsel %vm601, %v600, %v598
        %604 = vst [vmem:[#allocation1] ss:$2 sm:$0xff] %v220
        %v605 = vld.sshfl [vmem:[#allocation1] sm:$0xff pattern:$0x75316420]
        %v606 = vld.sshfl [vmem:[#allocation1 + $0x8] sm:$0xff pattern:$0x75316420]
        %609 = vrot.lane.b32.xlu0 %v605, 61
        %v610 = vpop.permute.xlu0 %609
        %611 = vrot.lane.b32.xlu0 %v606, 61
        %v612 = vpop.permute.xlu0 %611
        %vm613 = vcmp.lt.s32.totalorder %v232, 61
        %v614 = vsel %vm613, %v610, %v612
        %v615 = vsel %vm613, %v612, %v610
        %v618 = vrot.slane %v614, 4
        %v619 = vrot.slane %v615, 4
        %v622 = vsel %vm247, %v602, %v618
        %v623 = vsel %vm247, %v603, %v619
        %624 = vst [vmem:[#allocation2 + $0xb0] sm:$0xff] %v622
        %625 = vst [vmem:[#allocation2 + $0xb8] sm:$0xff] %v623
        %626 = vst [vmem:[#allocation1] ss:$2 sm:$0xff] %v220
        %v627 = vld.sshfl [vmem:[#allocation1] sm:$0xff pattern:$0x75316420]
        %v628 = vld.sshfl [vmem:[#allocation1 + $0x8] sm:$0xff pattern:$0x75316420]
        %631 = vrot.lane.b32.xlu0 %v627, 60
        %v632 = vpop.permute.xlu0 %631
        %633 = vrot.lane.b32.xlu0 %v628, 60
        %v634 = vpop.permute.xlu0 %633
        %vm635 = vcmp.lt.s32.totalorder %v232, 60
        %v636 = vsel %vm635, %v632, %v634
        %v637 = vsel %vm635, %v634, %v632
        %638 = vst [vmem:[#allocation2 + $0xc0] sm:$0xf] %v636
        %639 = vst [vmem:[#allocation2 + $0xc8] sm:$0xf] %v637
        %v640 = vld [vmem:[%s1] sm:$0xff]
        %v641 = vld [vmem:[#allocation2] sm:$0xff]
        %v642 = vld [vmem:[#allocation2 + $0x8] sm:$0xff]
        %v643 = vld [vmem:[#allocation2 + $0x10] sm:$0xff]
        %v644 = vld [vmem:[#allocation2 + $0x18] sm:$0xff]
        %v645 = vld [vmem:[#allocation2 + $0x20] sm:$0xff]
        %v646 = vld [vmem:[#allocation2 + $0x28] sm:$0xff]
        %v647 = vld [vmem:[#allocation2 + $0x30] sm:$0xff]
        %v648 = vld [vmem:[#allocation2 + $0x38] sm:$0xff]
        %v649 = vld [vmem:[#allocation2 + $0x40] sm:$0xff]
        %v650 = vld [vmem:[#allocation2 + $0x48] sm:$0xff]
        %v651 = vld [vmem:[#allocation2 + $0x50] sm:$0xff]
        %v652 = vld [vmem:[#allocation2 + $0x58] sm:$0xff]
        %v653 = vld [vmem:[#allocation2 + $0x60] sm:$0xff]
        %v654 = vld [vmem:[#allocation2 + $0x68] sm:$0xff]
        %v655 = vld [vmem:[#allocation2 + $0x70] sm:$0xff]
        %v656 = vld [vmem:[#allocation2 + $0x78] sm:$0xff]
        %v657 = vld [vmem:[#allocation2 + $0x80] sm:$0xff]
        %v658 = vld [vmem:[#allocation2 + $0x88] sm:$0xff]
        %v659 = vld [vmem:[#allocation2 + $0x90] sm:$0xff]
        %v660 = vld [vmem:[#allocation2 + $0x98] sm:$0xff]
        %v661 = vld [vmem:[#allocation2 + $0xa0] sm:$0xff]
        %v662 = vld [vmem:[#allocation2 + $0xa8] sm:$0xff]
        %v663 = vld [vmem:[#allocation2 + $0xb0] sm:$0xff]
        %v664 = vld [vmem:[#allocation2 + $0xb8] sm:$0xff]
        %v665 = vld [vmem:[#allocation2 + $0xc0] sm:$0xff]
        %v666 = vld [vmem:[#allocation2 + $0xc8] sm:$0xff]
        %v667 = vld [vmem:[#allocation2 + $0xd0] sm:$0xff]
        %v668 = vld [vmem:[#allocation2 + $0xd8] sm:$0xff]
        %v669 = vld [vmem:[#allocation2 + $0xe0] sm:$0xff]
        %v670 = vld [vmem:[#allocation2 + $0xe8] sm:$0xff]
        %v671 = vld [vmem:[#allocation2 + $0xf0] sm:$0xff]
        %v672 = vld [vmem:[#allocation2 + $0xf8] sm:$0xff]
        %673 = vmatpush.msra.mxu0 %v671
        %674 = vmatpush.msra.mxu0 %v669
        %675 = vmatpush.msra.mxu0 %v667
        %676 = vmatpush.msra.mxu0 %v665
        %677 = vmatpush.msra.mxu0 %v663
        %678 = vmatpush.msra.mxu0 %v661
        %679 = vmatpush.msra.mxu0 %v659
        %680 = vmatpush.msra.mxu0 %v657
        %681 = vmatpush.msra.mxu0 %v655
        %682 = vmatpush.msra.mxu0 %v653
        %683 = vmatpush.msra.mxu0 %v651
        %684 = vmatpush.msra.mxu0 %v649
        %685 = vmatpush.msra.mxu0 %v647
        %686 = vmatpush.msra.mxu0 %v645
        %687 = vmatpush.msra.mxu0 %v643
        %688 = vmatpush.msra.mxu0 %v641
        %689 = vmatmul.f32.gmra.mxu0 %v640
        %v690 = vpop.f32.mrf.mxu0
        %v691 = vadd.f32 0.0, %v690
        %692 = vdwg.mxu0
        %693 = vmatpush.msra.mxu0 %v672
        %694 = vmatpush.msra.mxu0 %v670
        %695 = vmatpush.msra.mxu0 %v668
        %696 = vmatpush.msra.mxu0 %v666
        %697 = vmatpush.msra.mxu0 %v664
        %698 = vmatpush.msra.mxu0 %v662
        %699 = vmatpush.msra.mxu0 %v660
        %700 = vmatpush.msra.mxu0 %v658
        %701 = vmatpush.msra.mxu0 %v656
        %702 = vmatpush.msra.mxu0 %v654
        %703 = vmatpush.msra.mxu0 %v652
        %704 = vmatpush.msra.mxu0 %v650
        %705 = vmatpush.msra.mxu0 %v648
        %706 = vmatpush.msra.mxu0 %v646
        %707 = vmatpush.msra.mxu0 %v644
        %708 = vmatpush.msra.mxu0 %v642
        %709 = vmatmul.f32.gmra.mxu0 %v640
        %v710 = vpop.f32.mrf.mxu0
        %v711 = vadd.f32 0.0, %v710
        %712 = vdwg.mxu0
        %v713 = vmax.f32 %v691, 0.0
        %v714 = vmax.f32 %v711, 0.0
        %v715 = vld [vmem:[%s3] sm:$0x1]
        %v716 = vld [vmem:[#allocation3] sm:$0xff]
        %v717 = vld [vmem:[#allocation3 + $0x8] sm:$0xff]
        %v718 = vld [vmem:[#allocation3 + $0x10] sm:$0xff]
        %v719 = vld [vmem:[#allocation3 + $0x18] sm:$0xff]
        %v720 = vld [vmem:[#allocation3 + $0x20] sm:$0xff]
        %v721 = vld [vmem:[#allocation3 + $0x28] sm:$0xff]
        %v722 = vld [vmem:[#allocation3 + $0x30] sm:$0xff]
        %v723 = vld [vmem:[#allocation3 + $0x38] sm:$0xff]
        %v724 = vld [vmem:[#allocation3 + $0x40] sm:$0xff]
        %v725 = vld [vmem:[#allocation3 + $0x48] sm:$0xff]
        %v726 = vld [vmem:[#allocation3 + $0x50] sm:$0xff]
        %v727 = vld [vmem:[#allocation3 + $0x58] sm:$0xff]
        %v728 = vld [vmem:[#allocation3 + $0x60] sm:$0xff]
        %v729 = vld [vmem:[#allocation3 + $0x68] sm:$0xff]
        %v730 = vld [vmem:[#allocation3 + $0x70] sm:$0xff]
        %v731 = vld [vmem:[#allocation3 + $0x78] sm:$0xff]
        %v732 = vld [vmem:[#allocation3 + $0x80] sm:$0xff]
        %v733 = vld [vmem:[#allocation3 + $0x88] sm:$0xff]
        %v734 = vld [vmem:[#allocation3 + $0x90] sm:$0xff]
        %v735 = vld [vmem:[#allocation3 + $0x98] sm:$0xff]
        %v736 = vld [vmem:[#allocation3 + $0xa0] sm:$0xff]
        %v737 = vld [vmem:[#allocation3 + $0xa8] sm:$0xff]
        %v738 = vld [vmem:[#allocation3 + $0xb0] sm:$0xff]
        %v739 = vld [vmem:[#allocation3 + $0xb8] sm:$0xff]
        %v740 = vld [vmem:[#allocation3 + $0xc0] sm:$0xff]
        %v741 = vld [vmem:[#allocation3 + $0xc8] sm:$0xff]
        %v742 = vld [vmem:[#allocation3 + $0xd0] sm:$0xff]
        %v743 = vld [vmem:[#allocation3 + $0xd8] sm:$0xff]
        %v744 = vld [vmem:[#allocation3 + $0xe0] sm:$0xff]
        %v745 = vld [vmem:[#allocation3 + $0xe8] sm:$0xff]
        %v746 = vld [vmem:[#allocation3 + $0xf0] sm:$0xff]
        %v747 = vld [vmem:[#allocation3 + $0xf8] sm:$0xff]
        %748 = vmatpush.msra.mxu0 %v731
        %749 = vmatpush.msra.mxu0 %v730
        %750 = vmatpush.msra.mxu0 %v729
        %751 = vmatpush.msra.mxu0 %v728
        %752 = vmatpush.msra.mxu0 %v727
        %753 = vmatpush.msra.mxu0 %v726
        %754 = vmatpush.msra.mxu0 %v725
        %755 = vmatpush.msra.mxu0 %v724
        %756 = vmatpush.msra.mxu0 %v723
        %757 = vmatpush.msra.mxu0 %v722
        %758 = vmatpush.msra.mxu0 %v721
        %759 = vmatpush.msra.mxu0 %v720
        %760 = vmatpush.msra.mxu0 %v719
        %761 = vmatpush.msra.mxu0 %v718
        %762 = vmatpush.msra.mxu0 %v717
        %763 = vmatpush.msra.mxu0 %v716
        %764 = vmatmul.f32.gmra.mxu0 %v713
        %v765 = vpop.f32.mrf.mxu0
        %v766 = vadd.f32 0.0, %v765
        %767 = vdwg.mxu0
        %768 = vmatpush.msra.mxu0 %v747
        %769 = vmatpush.msra.mxu0 %v746
        %770 = vmatpush.msra.mxu0 %v745
        %771 = vmatpush.msra.mxu0 %v744
        %772 = vmatpush.msra.mxu0 %v743
        %773 = vmatpush.msra.mxu0 %v742
        %774 = vmatpush.msra.mxu0 %v741
        %775 = vmatpush.msra.mxu0 %v740
        %776 = vmatpush.msra.mxu0 %v739
        %777 = vmatpush.msra.mxu0 %v738
        %778 = vmatpush.msra.mxu0 %v737
        %779 = vmatpush.msra.mxu0 %v736
        %780 = vmatpush.msra.mxu0 %v735
        %781 = vmatpush.msra.mxu0 %v734
        %782 = vmatpush.msra.mxu0 %v733
        %783 = vmatpush.msra.mxu0 %v732
        %784 = vmatmul.f32.gmra.mxu0 %v714
        %v785 = vpop.f32.mrf.mxu0
        %v786 = vadd.f32 %v766, %v785
        %787 = vdwg.mxu0
        %s788 = scalar_lea.vmem [#allocation3], 256
        %v789 = vld [vmem:[%s788] sm:$0xff]
        %v790 = vld [vmem:[%s788 + $0x8] sm:$0xff]
        %v791 = vld [vmem:[%s788 + $0x10] sm:$0xff]
        %v792 = vld [vmem:[%s788 + $0x18] sm:$0xff]
        %v793 = vld [vmem:[%s788 + $0x20] sm:$0xff]
        %v794 = vld [vmem:[%s788 + $0x28] sm:$0xff]
        %v795 = vld [vmem:[%s788 + $0x30] sm:$0xff]
        %v796 = vld [vmem:[%s788 + $0x38] sm:$0xff]
        %v797 = vld [vmem:[%s788 + $0x40] sm:$0xff]
        %v798 = vld [vmem:[%s788 + $0x48] sm:$0xff]
        %v799 = vld [vmem:[%s788 + $0x50] sm:$0xff]
        %v800 = vld [vmem:[%s788 + $0x58] sm:$0xff]
        %v801 = vld [vmem:[%s788 + $0x60] sm:$0xff]
        %v802 = vld [vmem:[%s788 + $0x68] sm:$0xff]
        %v803 = vld [vmem:[%s788 + $0x70] sm:$0xff]
        %v804 = vld [vmem:[%s788 + $0x78] sm:$0xff]
        %v805 = vld [vmem:[%s788 + $0x80] sm:$0xff]
        %v806 = vld [vmem:[%s788 + $0x88] sm:$0xff]
        %v807 = vld [vmem:[%s788 + $0x90] sm:$0xff]
        %v808 = vld [vmem:[%s788 + $0x98] sm:$0xff]
        %v809 = vld [vmem:[%s788 + $0xa0] sm:$0xff]
        %v810 = vld [vmem:[%s788 + $0xa8] sm:$0xff]
        %v811 = vld [vmem:[%s788 + $0xb0] sm:$0xff]
        %v812 = vld [vmem:[%s788 + $0xb8] sm:$0xff]
        %v813 = vld [vmem:[%s788 + $0xc0] sm:$0xff]
        %v814 = vld [vmem:[%s788 + $0xc8] sm:$0xff]
        %v815 = vld [vmem:[%s788 + $0xd0] sm:$0xff]
        %v816 = vld [vmem:[%s788 + $0xd8] sm:$0xff]
        %v817 = vld [vmem:[%s788 + $0xe0] sm:$0xff]
        %v818 = vld [vmem:[%s788 + $0xe8] sm:$0xff]
        %v819 = vld [vmem:[%s788 + $0xf0] sm:$0xff]
        %v820 = vld [vmem:[%s788 + $0xf8] sm:$0xff]
        %v823 = vrot.slane %v713, 1
        %v824 = vrot.slane %v714, 1
        %827 = vmatpush.msra.mxu0 %v804
        %828 = vmatpush.msra.mxu0 %v803
        %829 = vmatpush.msra.mxu0 %v802
        %830 = vmatpush.msra.mxu0 %v801
        %831 = vmatpush.msra.mxu0 %v800
        %832 = vmatpush.msra.mxu0 %v799
        %833 = vmatpush.msra.mxu0 %v798
        %834 = vmatpush.msra.mxu0 %v797
        %835 = vmatpush.msra.mxu0 %v796
        %836 = vmatpush.msra.mxu0 %v795
        %837 = vmatpush.msra.mxu0 %v794
        %838 = vmatpush.msra.mxu0 %v793
        %839 = vmatpush.msra.mxu0 %v792
        %840 = vmatpush.msra.mxu0 %v791
        %841 = vmatpush.msra.mxu0 %v790
        %842 = vmatpush.msra.mxu0 %v789
        %843 = vmatmul.f32.gmra.mxu0 %v823
        %v844 = vpop.f32.mrf.mxu0
        %v845 = vadd.f32 0.0, %v844
        %846 = vdwg.mxu0
        %847 = vmatpush.msra.mxu0 %v820
        %848 = vmatpush.msra.mxu0 %v819
        %849 = vmatpush.msra.mxu0 %v818
        %850 = vmatpush.msra.mxu0 %v817
        %851 = vmatpush.msra.mxu0 %v816
        %852 = vmatpush.msra.mxu0 %v815
        %853 = vmatpush.msra.mxu0 %v814
        %854 = vmatpush.msra.mxu0 %v813
        %855 = vmatpush.msra.mxu0 %v812
        %856 = vmatpush.msra.mxu0 %v811
        %857 = vmatpush.msra.mxu0 %v810
        %858 = vmatpush.msra.mxu0 %v809
        %859 = vmatpush.msra.mxu0 %v808
        %860 = vmatpush.msra.mxu0 %v807
        %861 = vmatpush.msra.mxu0 %v806
        %862 = vmatpush.msra.mxu0 %v805
        %863 = vmatmul.f32.gmra.mxu0 %v824
        %v864 = vpop.f32.mrf.mxu0
        %v865 = vadd.f32 %v845, %v864
        %866 = vdwg.mxu0
        %s867 = scalar_lea.vmem [#allocation3], 512
        %v868 = vld [vmem:[%s867] sm:$0xff]
        %v869 = vld [vmem:[%s867 + $0x8] sm:$0xff]
        %v870 = vld [vmem:[%s867 + $0x10] sm:$0xff]
        %v871 = vld [vmem:[%s867 + $0x18] sm:$0xff]
        %v872 = vld [vmem:[%s867 + $0x20] sm:$0xff]
        %v873 = vld [vmem:[%s867 + $0x28] sm:$0xff]
        %v874 = vld [vmem:[%s867 + $0x30] sm:$0xff]
        %v875 = vld [vmem:[%s867 + $0x38] sm:$0xff]
        %v876 = vld [vmem:[%s867 + $0x40] sm:$0xff]
        %v877 = vld [vmem:[%s867 + $0x48] sm:$0xff]
        %v878 = vld [vmem:[%s867 + $0x50] sm:$0xff]
        %v879 = vld [vmem:[%s867 + $0x58] sm:$0xff]
        %v880 = vld [vmem:[%s867 + $0x60] sm:$0xff]
        %v881 = vld [vmem:[%s867 + $0x68] sm:$0xff]
        %v882 = vld [vmem:[%s867 + $0x70] sm:$0xff]
        %v883 = vld [vmem:[%s867 + $0x78] sm:$0xff]
        %v884 = vld [vmem:[%s867 + $0x80] sm:$0xff]
        %v885 = vld [vmem:[%s867 + $0x88] sm:$0xff]
        %v886 = vld [vmem:[%s867 + $0x90] sm:$0xff]
        %v887 = vld [vmem:[%s867 + $0x98] sm:$0xff]
        %v888 = vld [vmem:[%s867 + $0xa0] sm:$0xff]
        %v889 = vld [vmem:[%s867 + $0xa8] sm:$0xff]
        %v890 = vld [vmem:[%s867 + $0xb0] sm:$0xff]
        %v891 = vld [vmem:[%s867 + $0xb8] sm:$0xff]
        %v892 = vld [vmem:[%s867 + $0xc0] sm:$0xff]
        %v893 = vld [vmem:[%s867 + $0xc8] sm:$0xff]
        %v894 = vld [vmem:[%s867 + $0xd0] sm:$0xff]
        %v895 = vld [vmem:[%s867 + $0xd8] sm:$0xff]
        %v896 = vld [vmem:[%s867 + $0xe0] sm:$0xff]
        %v897 = vld [vmem:[%s867 + $0xe8] sm:$0xff]
        %v898 = vld [vmem:[%s867 + $0xf0] sm:$0xff]
        %v899 = vld [vmem:[%s867 + $0xf8] sm:$0xff]
        %v900 = vrot.slane %v713, 2
        %v901 = vrot.slane %v714, 2
        %904 = vmatpush.msra.mxu0 %v883
        %905 = vmatpush.msra.mxu0 %v882
        %906 = vmatpush.msra.mxu0 %v881
        %907 = vmatpush.msra.mxu0 %v880
        %908 = vmatpush.msra.mxu0 %v879
        %909 = vmatpush.msra.mxu0 %v878
        %910 = vmatpush.msra.mxu0 %v877
        %911 = vmatpush.msra.mxu0 %v876
        %912 = vmatpush.msra.mxu0 %v875
        %913 = vmatpush.msra.mxu0 %v874
        %914 = vmatpush.msra.mxu0 %v873
        %915 = vmatpush.msra.mxu0 %v872
        %916 = vmatpush.msra.mxu0 %v871
        %917 = vmatpush.msra.mxu0 %v870
        %918 = vmatpush.msra.mxu0 %v869
        %919 = vmatpush.msra.mxu0 %v868
        %920 = vmatmul.f32.gmra.mxu0 %v900
        %v921 = vpop.f32.mrf.mxu0
        %v922 = vadd.f32 0.0, %v921
        %923 = vdwg.mxu0
        %924 = vmatpush.msra.mxu0 %v899
        %925 = vmatpush.msra.mxu0 %v898
        %926 = vmatpush.msra.mxu0 %v897
        %927 = vmatpush.msra.mxu0 %v896
        %928 = vmatpush.msra.mxu0 %v895
        %929 = vmatpush.msra.mxu0 %v894
        %930 = vmatpush.msra.mxu0 %v893
        %931 = vmatpush.msra.mxu0 %v892
        %932 = vmatpush.msra.mxu0 %v891
        %933 = vmatpush.msra.mxu0 %v890
        %934 = vmatpush.msra.mxu0 %v889
        %935 = vmatpush.msra.mxu0 %v888
        %936 = vmatpush.msra.mxu0 %v887
        %937 = vmatpush.msra.mxu0 %v886
        %938 = vmatpush.msra.mxu0 %v885
        %939 = vmatpush.msra.mxu0 %v884
        %940 = vmatmul.f32.gmra.mxu0 %v901
        %v941 = vpop.f32.mrf.mxu0
        %v942 = vadd.f32 %v922, %v941
        %943 = vdwg.mxu0
        %s944 = scalar_lea.vmem [#allocation3], 768
        %v945 = vld [vmem:[%s944] sm:$0xff]
        %v946 = vld [vmem:[%s944 + $0x8] sm:$0xff]
        %v947 = vld [vmem:[%s944 + $0x10] sm:$0xff]
        %v948 = vld [vmem:[%s944 + $0x18] sm:$0xff]
        %v949 = vld [vmem:[%s944 + $0x20] sm:$0xff]
        %v950 = vld [vmem:[%s944 + $0x28] sm:$0xff]
        %v951 = vld [vmem:[%s944 + $0x30] sm:$0xff]
        %v952 = vld [vmem:[%s944 + $0x38] sm:$0xff]
        %v953 = vld [vmem:[%s944 + $0x40] sm:$0xff]
        %v954 = vld [vmem:[%s944 + $0x48] sm:$0xff]
        %v955 = vld [vmem:[%s944 + $0x50] sm:$0xff]
        %v956 = vld [vmem:[%s944 + $0x58] sm:$0xff]
        %v957 = vld [vmem:[%s944 + $0x60] sm:$0xff]
        %v958 = vld [vmem:[%s944 + $0x68] sm:$0xff]
        %v959 = vld [vmem:[%s944 + $0x70] sm:$0xff]
        %v960 = vld [vmem:[%s944 + $0x78] sm:$0xff]
        %v961 = vld [vmem:[%s944 + $0x80] sm:$0xff]
        %v962 = vld [vmem:[%s944 + $0x88] sm:$0xff]
        %v963 = vld [vmem:[%s944 + $0x90] sm:$0xff]
        %v964 = vld [vmem:[%s944 + $0x98] sm:$0xff]
        %v965 = vld [vmem:[%s944 + $0xa0] sm:$0xff]
        %v966 = vld [vmem:[%s944 + $0xa8] sm:$0xff]
        %v967 = vld [vmem:[%s944 + $0xb0] sm:$0xff]
        %v968 = vld [vmem:[%s944 + $0xb8] sm:$0xff]
        %v969 = vld [vmem:[%s944 + $0xc0] sm:$0xff]
        %v970 = vld [vmem:[%s944 + $0xc8] sm:$0xff]
        %v971 = vld [vmem:[%s944 + $0xd0] sm:$0xff]
        %v972 = vld [vmem:[%s944 + $0xd8] sm:$0xff]
        %v973 = vld [vmem:[%s944 + $0xe0] sm:$0xff]
        %v974 = vld [vmem:[%s944 + $0xe8] sm:$0xff]
        %v975 = vld [vmem:[%s944 + $0xf0] sm:$0xff]
        %v976 = vld [vmem:[%s944 + $0xf8] sm:$0xff]
        %v977 = vrot.slane %v713, 3
        %v978 = vrot.slane %v714, 3
        %981 = vmatpush.msra.mxu0 %v960
        %982 = vmatpush.msra.mxu0 %v959
        %983 = vmatpush.msra.mxu0 %v958
        %984 = vmatpush.msra.mxu0 %v957
        %985 = vmatpush.msra.mxu0 %v956
        %986 = vmatpush.msra.mxu0 %v955
        %987 = vmatpush.msra.mxu0 %v954
        %988 = vmatpush.msra.mxu0 %v953
        %989 = vmatpush.msra.mxu0 %v952
        %990 = vmatpush.msra.mxu0 %v951
        %991 = vmatpush.msra.mxu0 %v950
        %992 = vmatpush.msra.mxu0 %v949
        %993 = vmatpush.msra.mxu0 %v948
        %994 = vmatpush.msra.mxu0 %v947
        %995 = vmatpush.msra.mxu0 %v946
        %996 = vmatpush.msra.mxu0 %v945
        %997 = vmatmul.f32.gmra.mxu0 %v977
        %v998 = vpop.f32.mrf.mxu0
        %v999 = vadd.f32 0.0, %v998
        %1000 = vdwg.mxu0
        %1001 = vmatpush.msra.mxu0 %v976
        %1002 = vmatpush.msra.mxu0 %v975
        %1003 = vmatpush.msra.mxu0 %v974
        %1004 = vmatpush.msra.mxu0 %v973
        %1005 = vmatpush.msra.mxu0 %v972
        %1006 = vmatpush.msra.mxu0 %v971
        %1007 = vmatpush.msra.mxu0 %v970
        %1008 = vmatpush.msra.mxu0 %v969
        %1009 = vmatpush.msra.mxu0 %v968
        %1010 = vmatpush.msra.mxu0 %v967
        %1011 = vmatpush.msra.mxu0 %v966
        %1012 = vmatpush.msra.mxu0 %v965
        %1013 = vmatpush.msra.mxu0 %v964
        %1014 = vmatpush.msra.mxu0 %v963
        %1015 = vmatpush.msra.mxu0 %v962
        %1016 = vmatpush.msra.mxu0 %v961
        %1017 = vmatmul.f32.gmra.mxu0 %v978
        %v1018 = vpop.f32.mrf.mxu0
        %v1019 = vadd.f32 %v999, %v1018
        %1020 = vdwg.mxu0
        %s1021 = scalar_lea.vmem [#allocation3], 1024
        %v1022 = vld [vmem:[%s1021] sm:$0xff]
        %v1023 = vld [vmem:[%s1021 + $0x8] sm:$0xff]
        %v1024 = vld [vmem:[%s1021 + $0x10] sm:$0xff]
        %v1025 = vld [vmem:[%s1021 + $0x18] sm:$0xff]
        %v1026 = vld [vmem:[%s1021 + $0x20] sm:$0xff]
        %v1027 = vld [vmem:[%s1021 + $0x28] sm:$0xff]
        %v1028 = vld [vmem:[%s1021 + $0x30] sm:$0xff]
        %v1029 = vld [vmem:[%s1021 + $0x38] sm:$0xff]
        %v1030 = vld [vmem:[%s1021 + $0x40] sm:$0xff]
        %v1031 = vld [vmem:[%s1021 + $0x48] sm:$0xff]
        %v1032 = vld [vmem:[%s1021 + $0x50] sm:$0xff]
        %v1033 = vld [vmem:[%s1021 + $0x58] sm:$0xff]
        %v1034 = vld [vmem:[%s1021 + $0x60] sm:$0xff]
        %v1035 = vld [vmem:[%s1021 + $0x68] sm:$0xff]
        %v1036 = vld [vmem:[%s1021 + $0x70] sm:$0xff]
        %v1037 = vld [vmem:[%s1021 + $0x78] sm:$0xff]
        %v1038 = vld [vmem:[%s1021 + $0x80] sm:$0xff]
        %v1039 = vld [vmem:[%s1021 + $0x88] sm:$0xff]
        %v1040 = vld [vmem:[%s1021 + $0x90] sm:$0xff]
        %v1041 = vld [vmem:[%s1021 + $0x98] sm:$0xff]
        %v1042 = vld [vmem:[%s1021 + $0xa0] sm:$0xff]
        %v1043 = vld [vmem:[%s1021 + $0xa8] sm:$0xff]
        %v1044 = vld [vmem:[%s1021 + $0xb0] sm:$0xff]
        %v1045 = vld [vmem:[%s1021 + $0xb8] sm:$0xff]
        %v1046 = vld [vmem:[%s1021 + $0xc0] sm:$0xff]
        %v1047 = vld [vmem:[%s1021 + $0xc8] sm:$0xff]
        %v1048 = vld [vmem:[%s1021 + $0xd0] sm:$0xff]
        %v1049 = vld [vmem:[%s1021 + $0xd8] sm:$0xff]
        %v1050 = vld [vmem:[%s1021 + $0xe0] sm:$0xff]
        %v1051 = vld [vmem:[%s1021 + $0xe8] sm:$0xff]
        %v1052 = vld [vmem:[%s1021 + $0xf0] sm:$0xff]
        %v1053 = vld [vmem:[%s1021 + $0xf8] sm:$0xff]
        %v1054 = vrot.slane %v713, 4
        %v1055 = vrot.slane %v714, 4
        %1058 = vmatpush.msra.mxu0 %v1037
        %1059 = vmatpush.msra.mxu0 %v1036
        %1060 = vmatpush.msra.mxu0 %v1035
        %1061 = vmatpush.msra.mxu0 %v1034
        %1062 = vmatpush.msra.mxu0 %v1033
        %1063 = vmatpush.msra.mxu0 %v1032
        %1064 = vmatpush.msra.mxu0 %v1031
        %1065 = vmatpush.msra.mxu0 %v1030
        %1066 = vmatpush.msra.mxu0 %v1029
        %1067 = vmatpush.msra.mxu0 %v1028
        %1068 = vmatpush.msra.mxu0 %v1027
        %1069 = vmatpush.msra.mxu0 %v1026
        %1070 = vmatpush.msra.mxu0 %v1025
        %1071 = vmatpush.msra.mxu0 %v1024
        %1072 = vmatpush.msra.mxu0 %v1023
        %1073 = vmatpush.msra.mxu0 %v1022
        %1074 = vmatmul.f32.gmra.mxu0 %v1054
        %v1075 = vpop.f32.mrf.mxu0
        %v1076 = vadd.f32 0.0, %v1075
        %1077 = vdwg.mxu0
        %1078 = vmatpush.msra.mxu0 %v1053
        %1079 = vmatpush.msra.mxu0 %v1052
        %1080 = vmatpush.msra.mxu0 %v1051
        %1081 = vmatpush.msra.mxu0 %v1050
        %1082 = vmatpush.msra.mxu0 %v1049
        %1083 = vmatpush.msra.mxu0 %v1048
        %1084 = vmatpush.msra.mxu0 %v1047
        %1085 = vmatpush.msra.mxu0 %v1046
        %1086 = vmatpush.msra.mxu0 %v1045
        %1087 = vmatpush.msra.mxu0 %v1044
        %1088 = vmatpush.msra.mxu0 %v1043
        %1089 = vmatpush.msra.mxu0 %v1042
        %1090 = vmatpush.msra.mxu0 %v1041
        %1091 = vmatpush.msra.mxu0 %v1040
        %1092 = vmatpush.msra.mxu0 %v1039
        %1093 = vmatpush.msra.mxu0 %v1038
        %1094 = vmatmul.f32.gmra.mxu0 %v1055
        %v1095 = vpop.f32.mrf.mxu0
        %v1096 = vadd.f32 %v1076, %v1095
        %1097 = vdwg.mxu0
        %s1098 = scalar_lea.vmem [#allocation3], 1280
        %v1099 = vld [vmem:[%s1098] sm:$0xff]
        %v1100 = vld [vmem:[%s1098 + $0x8] sm:$0xff]
        %v1101 = vld [vmem:[%s1098 + $0x10] sm:$0xff]
        %v1102 = vld [vmem:[%s1098 + $0x18] sm:$0xff]
        %v1103 = vld [vmem:[%s1098 + $0x20] sm:$0xff]
        %v1104 = vld [vmem:[%s1098 + $0x28] sm:$0xff]
        %v1105 = vld [vmem:[%s1098 + $0x30] sm:$0xff]
        %v1106 = vld [vmem:[%s1098 + $0x38] sm:$0xff]
        %v1107 = vld [vmem:[%s1098 + $0x40] sm:$0xff]
        %v1108 = vld [vmem:[%s1098 + $0x48] sm:$0xff]
        %v1109 = vld [vmem:[%s1098 + $0x50] sm:$0xff]
        %v1110 = vld [vmem:[%s1098 + $0x58] sm:$0xff]
        %v1111 = vld [vmem:[%s1098 + $0x60] sm:$0xff]
        %v1112 = vld [vmem:[%s1098 + $0x68] sm:$0xff]
        %v1113 = vld [vmem:[%s1098 + $0x70] sm:$0xff]
        %v1114 = vld [vmem:[%s1098 + $0x78] sm:$0xff]
        %v1115 = vld [vmem:[%s1098 + $0x80] sm:$0xff]
        %v1116 = vld [vmem:[%s1098 + $0x88] sm:$0xff]
        %v1117 = vld [vmem:[%s1098 + $0x90] sm:$0xff]
        %v1118 = vld [vmem:[%s1098 + $0x98] sm:$0xff]
        %v1119 = vld [vmem:[%s1098 + $0xa0] sm:$0xff]
        %v1120 = vld [vmem:[%s1098 + $0xa8] sm:$0xff]
        %v1121 = vld [vmem:[%s1098 + $0xb0] sm:$0xff]
        %v1122 = vld [vmem:[%s1098 + $0xb8] sm:$0xff]
        %v1123 = vld [vmem:[%s1098 + $0xc0] sm:$0xff]
        %v1124 = vld [vmem:[%s1098 + $0xc8] sm:$0xff]
        %v1125 = vld [vmem:[%s1098 + $0xd0] sm:$0xff]
        %v1126 = vld [vmem:[%s1098 + $0xd8] sm:$0xff]
        %v1127 = vld [vmem:[%s1098 + $0xe0] sm:$0xff]
        %v1128 = vld [vmem:[%s1098 + $0xe8] sm:$0xff]
        %v1129 = vld [vmem:[%s1098 + $0xf0] sm:$0xff]
        %v1130 = vld [vmem:[%s1098 + $0xf8] sm:$0xff]
        %v1131 = vrot.slane %v713, 5
        %v1132 = vrot.slane %v714, 5
        %1135 = vmatpush.msra.mxu0 %v1114
        %1136 = vmatpush.msra.mxu0 %v1113
        %1137 = vmatpush.msra.mxu0 %v1112
        %1138 = vmatpush.msra.mxu0 %v1111
        %1139 = vmatpush.msra.mxu0 %v1110
        %1140 = vmatpush.msra.mxu0 %v1109
        %1141 = vmatpush.msra.mxu0 %v1108
        %1142 = vmatpush.msra.mxu0 %v1107
        %1143 = vmatpush.msra.mxu0 %v1106
        %1144 = vmatpush.msra.mxu0 %v1105
        %1145 = vmatpush.msra.mxu0 %v1104
        %1146 = vmatpush.msra.mxu0 %v1103
        %1147 = vmatpush.msra.mxu0 %v1102
        %1148 = vmatpush.msra.mxu0 %v1101
        %1149 = vmatpush.msra.mxu0 %v1100
        %1150 = vmatpush.msra.mxu0 %v1099
        %1151 = vmatmul.f32.gmra.mxu0 %v1131
        %v1152 = vpop.f32.mrf.mxu0
        %v1153 = vadd.f32 0.0, %v1152
        %1154 = vdwg.mxu0
        %1155 = vmatpush.msra.mxu0 %v1130
        %1156 = vmatpush.msra.mxu0 %v1129
        %1157 = vmatpush.msra.mxu0 %v1128
        %1158 = vmatpush.msra.mxu0 %v1127
        %1159 = vmatpush.msra.mxu0 %v1126
        %1160 = vmatpush.msra.mxu0 %v1125
        %1161 = vmatpush.msra.mxu0 %v1124
        %1162 = vmatpush.msra.mxu0 %v1123
        %1163 = vmatpush.msra.mxu0 %v1122
        %1164 = vmatpush.msra.mxu0 %v1121
        %1165 = vmatpush.msra.mxu0 %v1120
        %1166 = vmatpush.msra.mxu0 %v1119
        %1167 = vmatpush.msra.mxu0 %v1118
        %1168 = vmatpush.msra.mxu0 %v1117
        %1169 = vmatpush.msra.mxu0 %v1116
        %1170 = vmatpush.msra.mxu0 %v1115
        %1171 = vmatmul.f32.gmra.mxu0 %v1132
        %v1172 = vpop.f32.mrf.mxu0
        %v1173 = vadd.f32 %v1153, %v1172
        %1174 = vdwg.mxu0
        %s1175 = scalar_lea.vmem [#allocation3], 1536
        %v1176 = vld [vmem:[%s1175] sm:$0xff]
        %v1177 = vld [vmem:[%s1175 + $0x8] sm:$0xff]
        %v1178 = vld [vmem:[%s1175 + $0x10] sm:$0xff]
        %v1179 = vld [vmem:[%s1175 + $0x18] sm:$0xff]
        %v1180 = vld [vmem:[%s1175 + $0x20] sm:$0xff]
        %v1181 = vld [vmem:[%s1175 + $0x28] sm:$0xff]
        %v1182 = vld [vmem:[%s1175 + $0x30] sm:$0xff]
        %v1183 = vld [vmem:[%s1175 + $0x38] sm:$0xff]
        %v1184 = vld [vmem:[%s1175 + $0x40] sm:$0xff]
        %v1185 = vld [vmem:[%s1175 + $0x48] sm:$0xff]
        %v1186 = vld [vmem:[%s1175 + $0x50] sm:$0xff]
        %v1187 = vld [vmem:[%s1175 + $0x58] sm:$0xff]
        %v1188 = vld [vmem:[%s1175 + $0x60] sm:$0xff]
        %v1189 = vld [vmem:[%s1175 + $0x68] sm:$0xff]
        %v1190 = vld [vmem:[%s1175 + $0x70] sm:$0xff]
        %v1191 = vld [vmem:[%s1175 + $0x78] sm:$0xff]
        %v1192 = vld [vmem:[%s1175 + $0x80] sm:$0xff]
        %v1193 = vld [vmem:[%s1175 + $0x88] sm:$0xff]
        %v1194 = vld [vmem:[%s1175 + $0x90] sm:$0xff]
        %v1195 = vld [vmem:[%s1175 + $0x98] sm:$0xff]
        %v1196 = vld [vmem:[%s1175 + $0xa0] sm:$0xff]
        %v1197 = vld [vmem:[%s1175 + $0xa8] sm:$0xff]
        %v1198 = vld [vmem:[%s1175 + $0xb0] sm:$0xff]
        %v1199 = vld [vmem:[%s1175 + $0xb8] sm:$0xff]
        %v1200 = vld [vmem:[%s1175 + $0xc0] sm:$0xff]
        %v1201 = vld [vmem:[%s1175 + $0xc8] sm:$0xff]
        %v1202 = vld [vmem:[%s1175 + $0xd0] sm:$0xff]
        %v1203 = vld [vmem:[%s1175 + $0xd8] sm:$0xff]
        %v1204 = vld [vmem:[%s1175 + $0xe0] sm:$0xff]
        %v1205 = vld [vmem:[%s1175 + $0xe8] sm:$0xff]
        %v1206 = vld [vmem:[%s1175 + $0xf0] sm:$0xff]
        %v1207 = vld [vmem:[%s1175 + $0xf8] sm:$0xff]
        %v1208 = vrot.slane %v713, 6
        %v1209 = vrot.slane %v714, 6
        %1212 = vmatpush.msra.mxu0 %v1191
        %1213 = vmatpush.msra.mxu0 %v1190
        %1214 = vmatpush.msra.mxu0 %v1189
        %1215 = vmatpush.msra.mxu0 %v1188
        %1216 = vmatpush.msra.mxu0 %v1187
        %1217 = vmatpush.msra.mxu0 %v1186
        %1218 = vmatpush.msra.mxu0 %v1185
        %1219 = vmatpush.msra.mxu0 %v1184
        %1220 = vmatpush.msra.mxu0 %v1183
        %1221 = vmatpush.msra.mxu0 %v1182
        %1222 = vmatpush.msra.mxu0 %v1181
        %1223 = vmatpush.msra.mxu0 %v1180
        %1224 = vmatpush.msra.mxu0 %v1179
        %1225 = vmatpush.msra.mxu0 %v1178
        %1226 = vmatpush.msra.mxu0 %v1177
        %1227 = vmatpush.msra.mxu0 %v1176
        %1228 = vmatmul.f32.gmra.mxu0 %v1208
        %v1229 = vpop.f32.mrf.mxu0
        %v1230 = vadd.f32 0.0, %v1229
        %1231 = vdwg.mxu0
        %1232 = vmatpush.msra.mxu0 %v1207
        %1233 = vmatpush.msra.mxu0 %v1206
        %1234 = vmatpush.msra.mxu0 %v1205
        %1235 = vmatpush.msra.mxu0 %v1204
        %1236 = vmatpush.msra.mxu0 %v1203
        %1237 = vmatpush.msra.mxu0 %v1202
        %1238 = vmatpush.msra.mxu0 %v1201
        %1239 = vmatpush.msra.mxu0 %v1200
        %1240 = vmatpush.msra.mxu0 %v1199
        %1241 = vmatpush.msra.mxu0 %v1198
        %1242 = vmatpush.msra.mxu0 %v1197
        %1243 = vmatpush.msra.mxu0 %v1196
        %1244 = vmatpush.msra.mxu0 %v1195
        %1245 = vmatpush.msra.mxu0 %v1194
        %1246 = vmatpush.msra.mxu0 %v1193
        %1247 = vmatpush.msra.mxu0 %v1192
        %1248 = vmatmul.f32.gmra.mxu0 %v1209
        %v1249 = vpop.f32.mrf.mxu0
        %v1250 = vadd.f32 %v1230, %v1249
        %1251 = vdwg.mxu0
        %s1252 = scalar_lea.vmem [#allocation3], 1792
        %v1253 = vld [vmem:[%s1252] sm:$0xff]
        %v1254 = vld [vmem:[%s1252 + $0x8] sm:$0xff]
        %v1255 = vld [vmem:[%s1252 + $0x10] sm:$0xff]
        %v1256 = vld [vmem:[%s1252 + $0x18] sm:$0xff]
        %v1257 = vld [vmem:[%s1252 + $0x20] sm:$0xff]
        %v1258 = vld [vmem:[%s1252 + $0x28] sm:$0xff]
        %v1259 = vld [vmem:[%s1252 + $0x30] sm:$0xff]
        %v1260 = vld [vmem:[%s1252 + $0x38] sm:$0xff]
        %v1261 = vld [vmem:[%s1252 + $0x40] sm:$0xff]
        %v1262 = vld [vmem:[%s1252 + $0x48] sm:$0xff]
        %v1263 = vld [vmem:[%s1252 + $0x50] sm:$0xff]
        %v1264 = vld [vmem:[%s1252 + $0x58] sm:$0xff]
        %v1265 = vld [vmem:[%s1252 + $0x60] sm:$0xff]
        %v1266 = vld [vmem:[%s1252 + $0x68] sm:$0xff]
        %v1267 = vld [vmem:[%s1252 + $0x70] sm:$0xff]
        %v1268 = vld [vmem:[%s1252 + $0x78] sm:$0xff]
        %v1269 = vld [vmem:[%s1252 + $0x80] sm:$0xff]
        %v1270 = vld [vmem:[%s1252 + $0x88] sm:$0xff]
        %v1271 = vld [vmem:[%s1252 + $0x90] sm:$0xff]
        %v1272 = vld [vmem:[%s1252 + $0x98] sm:$0xff]
        %v1273 = vld [vmem:[%s1252 + $0xa0] sm:$0xff]
        %v1274 = vld [vmem:[%s1252 + $0xa8] sm:$0xff]
        %v1275 = vld [vmem:[%s1252 + $0xb0] sm:$0xff]
        %v1276 = vld [vmem:[%s1252 + $0xb8] sm:$0xff]
        %v1277 = vld [vmem:[%s1252 + $0xc0] sm:$0xff]
        %v1278 = vld [vmem:[%s1252 + $0xc8] sm:$0xff]
        %v1279 = vld [vmem:[%s1252 + $0xd0] sm:$0xff]
        %v1280 = vld [vmem:[%s1252 + $0xd8] sm:$0xff]
        %v1281 = vld [vmem:[%s1252 + $0xe0] sm:$0xff]
        %v1282 = vld [vmem:[%s1252 + $0xe8] sm:$0xff]
        %v1283 = vld [vmem:[%s1252 + $0xf0] sm:$0xff]
        %v1284 = vld [vmem:[%s1252 + $0xf8] sm:$0xff]
        %v1285 = vrot.slane %v713, 7
        %v1286 = vrot.slane %v714, 7
        %1289 = vmatpush.msra.mxu0 %v1268
        %1290 = vmatpush.msra.mxu0 %v1267
        %1291 = vmatpush.msra.mxu0 %v1266
        %1292 = vmatpush.msra.mxu0 %v1265
        %1293 = vmatpush.msra.mxu0 %v1264
        %1294 = vmatpush.msra.mxu0 %v1263
        %1295 = vmatpush.msra.mxu0 %v1262
        %1296 = vmatpush.msra.mxu0 %v1261
        %1297 = vmatpush.msra.mxu0 %v1260
        %1298 = vmatpush.msra.mxu0 %v1259
        %1299 = vmatpush.msra.mxu0 %v1258
        %1300 = vmatpush.msra.mxu0 %v1257
        %1301 = vmatpush.msra.mxu0 %v1256
        %1302 = vmatpush.msra.mxu0 %v1255
        %1303 = vmatpush.msra.mxu0 %v1254
        %1304 = vmatpush.msra.mxu0 %v1253
        %1305 = vmatmul.f32.gmra.mxu0 %v1285
        %v1306 = vpop.f32.mrf.mxu0
        %v1307 = vadd.f32 0.0, %v1306
        %1308 = vdwg.mxu0
        %1309 = vmatpush.msra.mxu0 %v1284
        %1310 = vmatpush.msra.mxu0 %v1283
        %1311 = vmatpush.msra.mxu0 %v1282
        %1312 = vmatpush.msra.mxu0 %v1281
        %1313 = vmatpush.msra.mxu0 %v1280
        %1314 = vmatpush.msra.mxu0 %v1279
        %1315 = vmatpush.msra.mxu0 %v1278
        %1316 = vmatpush.msra.mxu0 %v1277
        %1317 = vmatpush.msra.mxu0 %v1276
        %1318 = vmatpush.msra.mxu0 %v1275
        %1319 = vmatpush.msra.mxu0 %v1274
        %1320 = vmatpush.msra.mxu0 %v1273
        %1321 = vmatpush.msra.mxu0 %v1272
        %1322 = vmatpush.msra.mxu0 %v1271
        %1323 = vmatpush.msra.mxu0 %v1270
        %1324 = vmatpush.msra.mxu0 %v1269
        %1325 = vmatmul.f32.gmra.mxu0 %v1286
        %v1326 = vpop.f32.mrf.mxu0
        %v1327 = vadd.f32 %v1307, %v1326
        %1328 = vdwg.mxu0
        %v1330 = vrot.slane %v865, 7
        %v1333 = vrot.slane %v942, 6
        %v1336 = vrot.slane %v1019, 5
        %v1339 = vrot.slane %v1096, 4
        %v1342 = vrot.slane %v1173, 3
        %v1345 = vrot.slane %v1250, 2
        %v1348 = vrot.slane %v1327, 1
        %vm1350 = vcmask 1040384
        %v1351 = vsel %vm1350, %v786, %v1330
        %vm1352 = vcmask 1041408
        %v1353 = vsel %vm1352, %v1351, %v1333
        %vm1354 = vcmask 1042432
        %v1355 = vsel %vm1354, %v1353, %v1336
        %v1356 = vsel %vm247, %v1355, %v1339
        %vm1357 = vcmask 1044480
        %v1358 = vsel %vm1357, %v1356, %v1342
        %vm1359 = vcmask 1045504
        %v1360 = vsel %vm1359, %v1358, %v1345
        %vm1361 = vcmask 1046528
        %v1362 = vsel %vm1361, %v1360, %v1348
        %v1363 = vrot.slane %v1362, 4
        %v1364 = vadd.f32 %v1362, %v1363
        %v1365 = vrot.slane %v1364, 2
        %v1366 = vadd.f32 %v1364, %v1365
        %v1367 = vrot.slane %v1366, 1
        %v1368 = vadd.f32 %v1366, %v1367
        %v1369 = vadd.f32 %v1368, %v715
        %v1370 = vsel %vm1350, %v1369, -inf
        %1371 = vmax.xlane.f32.xlu0 %v1370
        %v1372 = vpop.xlane.xlu0 %1371
        %v1373 = vsub.f32 %v1369, %v1372
        %v1374 = vmul.f32 %v1373, 1.442695
        %v1375 = vpow.pop %v1374
        %v1376 = vsel %vm1350, %v1375, 0.0
        %1377 = vadd.xlane.f32.xlu0 %v1376
        %v1378 = vpop.xlane.xlu0 %1377
        %v1379 = vrcp.pop %v1378
        %v1380 = vmul.f32 %v1378, %v1379
        %v1381 = vsub.f32 1.0, %v1380
        %v1382 = vmul.f32 %v1379, %v1381
        %v1383 = vadd.f32 %v1379, %v1382
        %vm1384 = vweird.f32 %v1378
        %vm1385 = vweird.f32 %v1379
        %vm1386 = vmor %vm1384, %vm1385
        %v1387 = vsel %vm1386, %v1379, %v1383
        %v1388 = vand.u32 2147483647, %v1378
        %vm1389 = vcmp.eq.f32.partialorder %v1388, 8.507059e+37
        %v1390 = vand.u32 %v1378, 2147483648
        %v1391 = vor.u32 1.1754944e-38, %v1390
        %v1392 = vsel %vm1389, %v1391, %v1387
        %v1393 = vmul.f32 %v1375, %v1392
        %1394 = vst [vmem:[%s206] sm:$0x1] %v1393
        %s1395 = sand.u32 %s116, 1
        %s1396 = scalar_lea.sflag [#allocation5], %s1395
        %s1397 = sand.u32 %s116, 1
        %s1398 = scalar_lea.vmem [#allocation6], %s1397
        // Predicated region
        $region41: #{forward.1} parent=35 // pred_check
          %p1399 = pneg %p126
        $region42: #{forward.1} parent=35 // pred_check_branch
          %1401 = sbr.rel (%p1399) target = $region44
        $region43: #{forward.1} parent=35 // pred_region
          %1403 = vsyncadd %s1396, 0
          %s1404 = scalar_lea.hbm %s4, %s19
          %s1406 = sshll.u32 %s1398, 4
          %s1407 = int_to_ptr.vmem [resolvable:$true] %s1406
          %s1408 = sshll.u32 %s1404, 4
          %s1409 = int_to_ptr.hbm [resolvable:$true] %s1408
          %1411 = dma.vmem_to_hbm [thread:$0]  %s1407, 16, %s1409, %s1396
        $region44: #{forward.1} parent=35 // pred_fallthru
          _
      $region36: #{forward.1} parent=5 // pred_fallthru
        _
      %p1412 = scmp.le.s32.totalorder 2, %s14
      // Predicated region
      $region45: #{forward.1} parent=5 // pred_check
        %p1413 = pneg %p1412
      $region46: #{forward.1} parent=5 // pred_check_branch
        %1415 = sbr.rel (%p1413) target = $region48
      $region47: #{forward.1} parent=5 // pred_region
        %s1416 = ssub.s32 %s14, 2
        // Predicated region
        $region49: #{forward.1} parent=47 // pred_check
          %p1417 = pneg %p132
        $region50: #{forward.1} parent=47 // pred_check_branch
          %1419 = sbr.rel (%p1417) target = $region52
        $region51: #{forward.1} parent=47 // pred_region
          %s1420 = sand.u32 %s117, 1
          %s1421 = scalar_lea.sflag [#allocation5], %s1420
          %s1422 = sand.u32 %s117, 1
          %s1423 = scalar_lea.vmem [#allocation6], %s1422
          %1425 = dma.done %s1421, 16
        $region52: #{forward.1} parent=47 // pred_fallthru
          _
      $region48: #{forward.1} parent=5 // pred_fallthru
        _
    $region6: #{forward.1} parent=1 // loop_footer
      %s18 = sadd.s32 1, %s14
    $region7: #{forward.1} parent=1 // loop_footer_branch
      %13 = sbr.rel target = $region3
    $region8: #{forward.1} parent=1 // loop_exit
      _
    %1426 = vsyncpa [#allocation4], 1
    %s1427 = scalar_lea.sflag [#allocation4], 1
    %1428 = vsyncpa %s1427, 1
    %1429 = vsyncpa [#allocation5], 1
    %s1430 = scalar_lea.sflag [#allocation5], 1
    %1431 = vsyncpa %s1430, 1

</llo_original>
